<compile_context>
chip_gen: v5e
topology: v5e:2x2
jax: 0.10.0
libtpu: 0.0.40
codegen_flags: <defaults>
</compile_context>

<pallas_src>
import functools

import jax
import jax.numpy as jnp
from jax import lax
from jax.experimental import pallas as pl
from jax.experimental.pallas import tpu as pltpu

# Sub-pixel decomposition of ConvTranspose2d(k=4, s=2, p=1):
# output row oh = 2*a + dh pulls input row a + dh + u - 1 with kernel tap
# _KH[dh][u], u in {0,1} (identical structure along width).
_KH = ((3, 1), (2, 0))


def _decoder_kernel(x_ref, xh_ref, w1_ref, b1_ref, wd_ref, b2_ref, w3_ref, b3_ref,
                    out_ref, *, TH, W):
    bf16 = jnp.bfloat16
    C4 = w1_ref.shape[-1]
    Cout = w3_ref.shape[-1]

    r = pl.program_id(1)
    R = pl.num_programs(1)

    # Hoisted loads (avoid re-load / re-broadcast inside the unrolled phase loop).
    w1 = w1_ref[...]
    w3 = w3_ref[...]
    wd = wd_ref[...]
    b1 = b1_ref[...]
    b2 = b2_ref[...]
    b3 = b3_ref[...]

    xm = x_ref[0]                         # (TH, W, Cin)   bf16
    xh = xh_ref[0, 0]                     # (2,  W, Cin)   bf16 (top / bottom halo)
    Cin = xm.shape[-1]

    # ---- conv1 (1x1) + folded BN1 + ReLU on the strip incl. 1-row halos --------
    x_all = jnp.concatenate([xh[0:1], xm, xh[1:2]], axis=0)          # (TH+2, W, Cin)
    h1 = jnp.dot(x_all.reshape((TH + 2) * W, Cin), w1,
                 preferred_element_type=jnp.float32)
    h1 = jnp.maximum(h1 + b1, 0.0).astype(bf16).reshape(TH + 2, W, C4)

    # Deconv's implicit zero padding is in h1-space: at the image borders the
    # halo row must be exactly zero (NOT ReLU(b1) of a zero-padded x row).
    h1_top = jnp.where(r > 0, h1[0:1], jnp.zeros((1, W, C4), bf16))
    h1_bot = jnp.where(r < R - 1, h1[TH + 1:TH + 2], jnp.zeros((1, W, C4), bf16))
    h1 = jnp.concatenate([h1_top, h1[1:TH + 1], h1_bot], axis=0)     # (TH+2, W, C4)

    # ---- width zero-pad + the 3 width-shifted views (instead of 16 slices) -----
    zcol = jnp.zeros((TH + 2, 1, C4), bf16)
    hp = jnp.concatenate([zcol, h1, zcol], axis=1)                   # (TH+2, W+2, C4)
    vws = [hp[:, sw:sw + W, :] for sw in range(3)]                   # each (TH+2, W, C4)

    # ---- deconv2 (k=4,s=2,p=1) + BN2 + ReLU: one wide matmul per phase ----------
    h2s = []
    for dh in range(2):
        for dw in range(2):
            lhs = jnp.concatenate(
                [vws[dw + v][dh + u:dh + u + TH].reshape(TH * W, C4)
                 for u in range(2) for v in range(2)],
                axis=-1)                                             # (TH*W, 4*C4)
            acc = jnp.dot(lhs, wd[dh * 2 + dw],
                          preferred_element_type=jnp.float32)        # (TH*W, C4)
            h2s.append(jnp.maximum(acc + b2, 0.0).astype(bf16))

    # ---- conv3 (1x1) + BN3 + ReLU batched over all 4 phases ---------------------
    h2_all = jnp.concatenate(h2s, axis=0)                            # (4*TH*W, C4)
    z = jnp.dot(h2_all, w3, preferred_element_type=jnp.float32)
    z = jnp.maximum(z + b3, 0.0)                                     # (4*TH*W, Cout)
    out_ref[0] = z.reshape(4, TH * W, Cout)


def decoder_block_linknet(x_nchw, params, eps=1e-5, tile_h=8):
    N, Cin, H, W = x_nchw.shape
    C4 = params["conv1_w"].shape[0]
    Cout = params["conv3_w"].shape[0]
    f32, bf16 = jnp.float32, jnp.bfloat16

    # Row-strip size: largest divisor of H that is <= tile_h.
    th = max(1, min(tile_h, H))
    while H % th:
        th -= 1
    R = H // th

    def fold(g, b, m, v):
        s = g / jnp.sqrt(v + eps)
        return s, b - m * s

    s1, t1 = fold(params["bn1_g"], params["bn1_b"], params["bn1_m"], params["bn1_v"])
    s2, t2 = fold(params["bn2_g"], params["bn2_b"], params["bn2_m"], params["bn2_v"])
    s3, t3 = fold(params["bn3_g"], params["bn3_b"], params["bn3_m"], params["bn3_v"])

    # conv1 (1x1) folded with BN1:  W1f[ci, co] = w[co, ci] * s1[co]
    w1f = (params["conv1_w"][:, :, 0, 0] * s1[:, None]).T.astype(bf16)     # (Cin, C4)
    b1f = (params["conv1_b"] * s1 + t1).reshape(1, C4).astype(f32)

    # deconv2: PyTorch weight layout (Cin, Cout, kH, kW).  Build, per phase,
    # a (4*C4, C4) matrix whose K-blocks are the 4 taps in (u, v) order.
    wd_phases = []
    for dh in range(2):
        for dw in range(2):
            kblocks = [params["deconv2_w"][:, :, _KH[dh][u], _KH[dw][v]] * s2[None, :]
                       for u in range(2) for v in range(2)]                # each (C4, C4)
            wd_phases.append(jnp.concatenate(kblocks, axis=0))             # (4*C4, C4)
    wd = jnp.stack(wd_phases, axis=0).astype(bf16)                          # (4, 4*C4, C4)
    b2f = (params["deconv2_b"] * s2 + t2).reshape(1, C4).astype(f32)

    # conv3 (1x1) folded with BN3
    w3f = (params["conv3_w"][:, :, 0, 0] * s3[:, None]).T.astype(bf16)      # (C4, Cout)
    b3f = (params["conv3_b"] * s3 + t3).reshape(1, Cout).astype(f32)

    # NCHW -> channel-minor NHWC, bf16 (halves input DMA).
    x_hwc = x_nchw.transpose(0, 2, 3, 1).astype(bf16)                       # (N, H, W, Cin)

    # Per-strip halo rows (top = row r*th-1, bottom = row (r+1)*th; the zero rows
    # injected at the image borders are masked out again in h1-space inside the
    # kernel).  Prepared once so the kernel only needs standard, auto-pipelined
    # BlockSpecs.
    xp = jnp.pad(x_hwc, ((0, 0), (1, 1), (0, 0), (0, 0)))                   # (N, H+2, W, Cin)
    tops = xp[:, 0:R * th:th]                                               # (N, R, W, Cin)
    bots = xp[:, th + 1:R * th + 2:th]                                      # (N, R, W, Cin)
    x_halo = jnp.stack([tops, bots], axis=2)                                # (N, R, 2, W, Cin)

    out = pl.pallas_call(
        functools.partial(_decoder_kernel, TH=th, W=W),
        out_shape=jax.ShapeDtypeStruct((N, 4, H * W, Cout), f32),
        grid_spec=pltpu.PrefetchScalarGridSpec(
            num_scalar_prefetch=0,
            grid=(N, R),
            in_specs=[
                pl.BlockSpec((1, th, W, Cin), lambda n, r: (n, r, 0, 0)),
                pl.BlockSpec((1, 1, 2, W, Cin), lambda n, r: (n, r, 0, 0, 0)),
                pl.BlockSpec((Cin, C4), lambda n, r: (0, 0)),
                pl.BlockSpec((1, C4), lambda n, r: (0, 0)),
                pl.BlockSpec((4, 4 * C4, C4), lambda n, r: (0, 0, 0)),
                pl.BlockSpec((1, C4), lambda n, r: (0, 0)),
                pl.BlockSpec((C4, Cout), lambda n, r: (0, 0)),
                pl.BlockSpec((1, Cout), lambda n, r: (0, 0)),
            ],
            out_specs=pl.BlockSpec((1, 4, th * W, Cout), lambda n, r: (n, 0, r, 0)),
        ),
        compiler_params=pltpu.CompilerParams(
            dimension_semantics=("parallel", "parallel")),
    )(x_hwc, x_halo, w1f, b1f, wd, b2f, w3f, b3f)

    # (N, 4 phases, H*W, Cout) -> (N, 2H, 2W, Cout) -> NCHW
    out = out.reshape(N, 2, 2, H, W, Cout)
    out = out.transpose(0, 3, 1, 4, 2, 5).reshape(N, 2 * H, 2 * W, Cout)
    return out.transpose(0, 3, 1, 2)


# -------------------------- pure-JAX reference ------------------------------
def _ref_forward(x, params, eps=1e-5):
    def bn(y, g, b, m, v):
        return ((y - m[None, :, None, None]) / jnp.sqrt(v[None, :, None, None] + eps)
                * g[None, :, None, None] + b[None, :, None, None])

    dn = ("NCHW", "OIHW", "NCHW")
    h = lax.conv_general_dilated(x, params["conv1_w"], (1, 1), "VALID",
                                 dimension_numbers=dn)
    h = h + params["conv1_b"][None, :, None, None]
    h = jnp.maximum(bn(h, params["bn1_g"], params["bn1_b"],
                       params["bn1_m"], params["bn1_v"]), 0.0)

    wt = jnp.flip(params["deconv2_w"], (2, 3)).transpose(1, 0, 2, 3)
    h = lax.conv_general_dilated(h, wt, (1, 1), ((2, 2), (2, 2)),
                                 lhs_dilation=(2, 2), dimension_numbers=dn)
    h = h + params["deconv2_b"][None, :, None, None]
    h = jnp.maximum(bn(h, params["bn2_g"], params["bn2_b"],
                       params["bn2_m"], params["bn2_v"]), 0.0)

    h = lax.conv_general_dilated(h, params["conv3_w"], (1, 1), "VALID",
                                 dimension_numbers=dn)
    h = h + params["conv3_b"][None, :, None, None]
    h = jnp.maximum(bn(h, params["bn3_g"], params["bn3_b"],
                       params["bn3_m"], params["bn3_v"]), 0.0)
    return h


def _init_params(key, in_channels, n_filters):
    c4 = in_channels // 4
    ks = jax.random.split(key, 16)
    u = lambda k, s: jax.random.uniform(k, s, jnp.float32, 0.5, 1.5)
    n = lambda k, s, sc=0.2: sc * jax.random.normal(k, s, jnp.float32)
    return {
        "conv1_w": n(ks[0], (c4, in_channels, 1, 1)),
        "conv1_b": n(ks[1], (c4,)),
        "bn1_g": u(ks[2], (c4,)), "bn1_b": n(ks[3], (c4,), 0.1),
        "bn1_m": n(ks[4], (c4,), 0.1), "bn1_v": u(ks[4], (c4,)),
        "deconv2_w": n(ks[5], (c4, c4, 4, 4)),
        "deconv2_b": n(ks[6], (c4,)),
        "bn2_g": u(ks[7], (c4,)), "bn2_b": n(ks[8], (c4,), 0.1),
        "bn2_m": n(ks[9], (c4,), 0.1), "bn2_v": u(ks[9], (c4,)),
        "conv3_w": n(ks[10], (n_filters, c4, 1, 1)),
        "conv3_b": n(ks[11], (n_filters,)),
        "bn3_g": u(ks[12], (n_filters,)), "bn3_b": n(ks[13], (n_filters,), 0.1),
        "bn3_m": n(ks[14], (n_filters,), 0.1), "bn3_v": u(ks[14], (n_filters,)),
    }


if __name__ == "__main__":
    N, in_channels, n_filters, H, W = 2, 32, 16, 16, 16
    key = jax.random.PRNGKey(0)
    kx, kp = jax.random.split(key)
    x = jax.random.normal(kx, (N, in_channels, H, W), jnp.float32)
    params = _init_params(kp, in_channels, n_filters)

    out = decoder_block_linknet(x, params, tile_h=8)   # 2 row-strips -> exercises tiling + border masking
    out = jax.block_until_ready(out)

    ref = jax.block_until_ready(_ref_forward(x, params))
    assert out.shape == (N, n_filters, 2 * H, 2 * W), out.shape
    err = float(jnp.max(jnp.abs(out - ref)))
    scale = float(jnp.max(jnp.abs(ref))) + 1e-6
    # bf16 MXU matmuls -> loosened tolerance (relative to output magnitude).
    assert err / scale < 5e-2, f"max abs err {err} (ref max {scale})"
    print("KERNEL_OK")
</pallas_src>

<mosaic_0001>
module attributes {stable_mosaic.version = 11 : i64} {
  func.func @_decoder_kernel(%arg0: i32, %arg1: i32, %arg2: memref<1x8x16x32xbf16, #tpu.memory_space<vmem>>, %arg3: memref<1x1x2x16x32xbf16, #tpu.memory_space<vmem>>, %arg4: memref<32x8xbf16, #tpu.memory_space<vmem>>, %arg5: memref<1x8xf32, #tpu.memory_space<vmem>>, %arg6: memref<4x32x8xbf16, #tpu.memory_space<vmem>>, %arg7: memref<1x8xf32, #tpu.memory_space<vmem>>, %arg8: memref<8x16xbf16, #tpu.memory_space<vmem>>, %arg9: memref<1x16xf32, #tpu.memory_space<vmem>>, %arg10: memref<1x4x128x16xf32, #tpu.memory_space<vmem>>) attributes {dimension_semantics = [#tpu.dimension_semantics<parallel>, #tpu.dimension_semantics<parallel>], iteration_bounds = array<i64: 2, 2>, scalar_prefetch = 0 : i64, scratch_operands = 0 : i64, tpu.core_type = #tpu.core_type<tc>, window_params = [{transform_indices = @transform_0, window_bounds = array<i64: 1, 8, 16, 32>}, {transform_indices = @transform_1, window_bounds = array<i64: 1, 1, 2, 16, 32>}, {pipeline_mode = #tpu.pipeline_mode<synchronous>, transform_indices = @transform_2, window_bounds = array<i64: 32, 8>}, {pipeline_mode = #tpu.pipeline_mode<synchronous>, transform_indices = @transform_3, window_bounds = array<i64: 1, 8>}, {pipeline_mode = #tpu.pipeline_mode<synchronous>, transform_indices = @transform_4, window_bounds = array<i64: 4, 32, 8>}, {pipeline_mode = #tpu.pipeline_mode<synchronous>, transform_indices = @transform_5, window_bounds = array<i64: 1, 8>}, {pipeline_mode = #tpu.pipeline_mode<synchronous>, transform_indices = @transform_6, window_bounds = array<i64: 8, 16>}, {pipeline_mode = #tpu.pipeline_mode<synchronous>, transform_indices = @transform_7, window_bounds = array<i64: 1, 16>}, {transform_indices = @transform_8, window_bounds = array<i64: 1, 4, 128, 16>}]} {
    %c0 = arith.constant 0 : index
    %c0_0 = arith.constant 0 : index
    %0 = vector.load %arg4[%c0, %c0_0] : memref<32x8xbf16, #tpu.memory_space<vmem>>, vector<32x8xbf16>
    %c0_1 = arith.constant 0 : index
    %c0_2 = arith.constant 0 : index
    %1 = vector.load %arg8[%c0_1, %c0_2] : memref<8x16xbf16, #tpu.memory_space<vmem>>, vector<8x16xbf16>
    %c0_3 = arith.constant 0 : index
    %c0_4 = arith.constant 0 : index
    %c0_5 = arith.constant 0 : index
    %2 = vector.load %arg6[%c0_3, %c0_4, %c0_5] : memref<4x32x8xbf16, #tpu.memory_space<vmem>>, vector<4x32x8xbf16>
    %c0_6 = arith.constant 0 : index
    %c0_7 = arith.constant 0 : index
    %3 = vector.load %arg5[%c0_6, %c0_7] : memref<1x8xf32, #tpu.memory_space<vmem>>, vector<1x8xf32>
    %c0_8 = arith.constant 0 : index
    %c0_9 = arith.constant 0 : index
    %4 = vector.load %arg7[%c0_8, %c0_9] : memref<1x8xf32, #tpu.memory_space<vmem>>, vector<1x8xf32>
    %c0_10 = arith.constant 0 : index
    %c0_11 = arith.constant 0 : index
    %5 = vector.load %arg9[%c0_10, %c0_11] : memref<1x16xf32, #tpu.memory_space<vmem>>, vector<1x16xf32>
    %c0_12 = arith.constant 0 : index
    %c0_13 = arith.constant 0 : index
    %c0_14 = arith.constant 0 : index
    %c0_15 = arith.constant 0 : index
    %6 = vector.load %arg2[%c0_12, %c0_13, %c0_14, %c0_15] : memref<1x8x16x32xbf16, #tpu.memory_space<vmem>>, vector<1x8x16x32xbf16>
    %7 = vector.shape_cast %6 : vector<1x8x16x32xbf16> to vector<8x16x32xbf16>
    %c0_16 = arith.constant 0 : index
    %c0_17 = arith.constant 0 : index
    %c0_18 = arith.constant 0 : index
    %c0_19 = arith.constant 0 : index
    %c0_20 = arith.constant 0 : index
    %8 = vector.load %arg3[%c0_16, %c0_17, %c0_18, %c0_19, %c0_20] : memref<1x1x2x16x32xbf16, #tpu.memory_space<vmem>>, vector<1x1x2x16x32xbf16>
    %9 = vector.shape_cast %8 : vector<1x1x2x16x32xbf16> to vector<2x16x32xbf16>
    %10 = vector.extract_strided_slice %9 {offsets = [0, 0, 0], sizes = [1, 16, 32], strides = [1, 1, 1]} : vector<2x16x32xbf16> to vector<1x16x32xbf16>
    %11 = vector.extract_strided_slice %9 {offsets = [1, 0, 0], sizes = [1, 16, 32], strides = [1, 1, 1]} : vector<2x16x32xbf16> to vector<1x16x32xbf16>
    %12 = tpu.concatenate %10, %7, %11 in 0 : vector<1x16x32xbf16>, vector<8x16x32xbf16>, vector<1x16x32xbf16> -> vector<10x16x32xbf16>
    %13 = vector.shape_cast %12 : vector<10x16x32xbf16> to vector<160x32xbf16>
    %cst = arith.constant dense<0.000000e+00> : vector<160x8xf32>
    %14 = tpu.matmul %13, %0, %cst {dimension_numbers = #tpu.dot_dimension_numbers<[1], [0], [0], [1], [0, 0, 1, 1], [], []>} : vector<160x32xbf16>, vector<32x8xbf16>, vector<160x8xf32> -> vector<160x8xf32>
    %15 = vector.broadcast %3 : vector<1x8xf32> to vector<160x8xf32>
    %16 = arith.addf %14, %15 : vector<160x8xf32>
    %cst_21 = arith.constant 0.000000e+00 : f32
    %17 = vector.broadcast %cst_21 : f32 to vector<160x8xf32>
    %18 = arith.maximumf %16, %17 : vector<160x8xf32>
    %19 = arith.truncf %18 : vector<160x8xf32> to vector<160x8xbf16>
    %20 = vector.shape_cast %19 : vector<160x8xbf16> to vector<10x16x8xbf16>
    %c0_i32 = arith.constant 0 : i32
    %21 = arith.cmpi sgt, %arg1, %c0_i32 : i32
    %22 = vector.extract_strided_slice %20 {offsets = [0, 0, 0], sizes = [1, 16, 8], strides = [1, 1, 1]} : vector<10x16x8xbf16> to vector<1x16x8xbf16>
    %cst_22 = arith.constant 0.000000e+00 : bf16
    %23 = vector.broadcast %cst_22 : bf16 to vector<1x16x8xbf16>
    %24 = arith.select %21, %22, %23 : vector<1x16x8xbf16>
    %c1_i32 = arith.constant 1 : i32
    %25 = arith.cmpi slt, %arg1, %c1_i32 : i32
    %26 = vector.extract_strided_slice %20 {offsets = [9, 0, 0], sizes = [1, 16, 8], strides = [1, 1, 1]} : vector<10x16x8xbf16> to vector<1x16x8xbf16>
    %cst_23 = arith.constant 0.000000e+00 : bf16
    %27 = vector.broadcast %cst_23 : bf16 to vector<1x16x8xbf16>
    %28 = arith.select %25, %26, %27 : vector<1x16x8xbf16>
    %29 = vector.extract_strided_slice %20 {offsets = [1, 0, 0], sizes = [8, 16, 8], strides = [1, 1, 1]} : vector<10x16x8xbf16> to vector<8x16x8xbf16>
    %30 = tpu.concatenate %24, %29, %28 in 0 : vector<1x16x8xbf16>, vector<8x16x8xbf16>, vector<1x16x8xbf16> -> vector<10x16x8xbf16>
    %cst_24 = arith.constant 0.000000e+00 : bf16
    %31 = vector.broadcast %cst_24 : bf16 to vector<10x1x8xbf16>
    %32 = tpu.concatenate %31, %30, %31 in 1 : vector<10x1x8xbf16>, vector<10x16x8xbf16>, vector<10x1x8xbf16> -> vector<10x18x8xbf16>
    %33 = vector.extract_strided_slice %32 {offsets = [0, 0, 0], sizes = [10, 16, 8], strides = [1, 1, 1]} : vector<10x18x8xbf16> to vector<10x16x8xbf16>
    %34 = vector.extract_strided_slice %32 {offsets = [0, 1, 0], sizes = [10, 16, 8], strides = [1, 1, 1]} : vector<10x18x8xbf16> to vector<10x16x8xbf16>
    %35 = vector.extract_strided_slice %32 {offsets = [0, 2, 0], sizes = [10, 16, 8], strides = [1, 1, 1]} : vector<10x18x8xbf16> to vector<10x16x8xbf16>
    %36 = vector.extract_strided_slice %33 {offsets = [0, 0, 0], sizes = [8, 16, 8], strides = [1, 1, 1]} : vector<10x16x8xbf16> to vector<8x16x8xbf16>
    %37 = vector.shape_cast %36 : vector<8x16x8xbf16> to vector<128x8xbf16>
    %38 = vector.extract_strided_slice %34 {offsets = [0, 0, 0], sizes = [8, 16, 8], strides = [1, 1, 1]} : vector<10x16x8xbf16> to vector<8x16x8xbf16>
    %39 = vector.shape_cast %38 : vector<8x16x8xbf16> to vector<128x8xbf16>
    %40 = vector.extract_strided_slice %33 {offsets = [1, 0, 0], sizes = [8, 16, 8], strides = [1, 1, 1]} : vector<10x16x8xbf16> to vector<8x16x8xbf16>
    %41 = vector.shape_cast %40 : vector<8x16x8xbf16> to vector<128x8xbf16>
    %42 = vector.extract_strided_slice %34 {offsets = [1, 0, 0], sizes = [8, 16, 8], strides = [1, 1, 1]} : vector<10x16x8xbf16> to vector<8x16x8xbf16>
    %43 = vector.shape_cast %42 : vector<8x16x8xbf16> to vector<128x8xbf16>
    %44 = tpu.concatenate %37, %39, %41, %43 in 1 : vector<128x8xbf16>, vector<128x8xbf16>, vector<128x8xbf16>, vector<128x8xbf16> -> vector<128x32xbf16>
    %45 = vector.extract_strided_slice %2 {offsets = [0, 0, 0], sizes = [1, 32, 8], strides = [1, 1, 1]} : vector<4x32x8xbf16> to vector<1x32x8xbf16>
    %46 = vector.shape_cast %45 : vector<1x32x8xbf16> to vector<32x8xbf16>
    %cst_25 = arith.constant dense<0.000000e+00> : vector<128x8xf32>
    %47 = tpu.matmul %44, %46, %cst_25 {dimension_numbers = #tpu.dot_dimension_numbers<[1], [0], [0], [1], [0, 0, 1, 1], [], []>} : vector<128x32xbf16>, vector<32x8xbf16>, vector<128x8xf32> -> vector<128x8xf32>
    %48 = vector.broadcast %4 : vector<1x8xf32> to vector<128x8xf32>
    %49 = arith.addf %47, %48 : vector<128x8xf32>
    %cst_26 = arith.constant 0.000000e+00 : f32
    %50 = vector.broadcast %cst_26 : f32 to vector<128x8xf32>
    %51 = arith.maximumf %49, %50 : vector<128x8xf32>
    %52 = arith.truncf %51 : vector<128x8xf32> to vector<128x8xbf16>
    %53 = vector.extract_strided_slice %34 {offsets = [0, 0, 0], sizes = [8, 16, 8], strides = [1, 1, 1]} : vector<10x16x8xbf16> to vector<8x16x8xbf16>
    %54 = vector.shape_cast %53 : vector<8x16x8xbf16> to vector<128x8xbf16>
    %55 = vector.extract_strided_slice %35 {offsets = [0, 0, 0], sizes = [8, 16, 8], strides = [1, 1, 1]} : vector<10x16x8xbf16> to vector<8x16x8xbf16>
    %56 = vector.shape_cast %55 : vector<8x16x8xbf16> to vector<128x8xbf16>
    %57 = vector.extract_strided_slice %34 {offsets = [1, 0, 0], sizes = [8, 16, 8], strides = [1, 1, 1]} : vector<10x16x8xbf16> to vector<8x16x8xbf16>
    %58 = vector.shape_cast %57 : vector<8x16x8xbf16> to vector<128x8xbf16>
    %59 = vector.extract_strided_slice %35 {offsets = [1, 0, 0], sizes = [8, 16, 8], strides = [1, 1, 1]} : vector<10x16x8xbf16> to vector<8x16x8xbf16>
    %60 = vector.shape_cast %59 : vector<8x16x8xbf16> to vector<128x8xbf16>
    %61 = tpu.concatenate %54, %56, %58, %60 in 1 : vector<128x8xbf16>, vector<128x8xbf16>, vector<128x8xbf16>, vector<128x8xbf16> -> vector<128x32xbf16>
    %62 = vector.extract_strided_slice %2 {offsets = [1, 0, 0], sizes = [1, 32, 8], strides = [1, 1, 1]} : vector<4x32x8xbf16> to vector<1x32x8xbf16>
    %63 = vector.shape_cast %62 : vector<1x32x8xbf16> to vector<32x8xbf16>
    %cst_27 = arith.constant dense<0.000000e+00> : vector<128x8xf32>
    %64 = tpu.matmul %61, %63, %cst_27 {dimension_numbers = #tpu.dot_dimension_numbers<[1], [0], [0], [1], [0, 0, 1, 1], [], []>} : vector<128x32xbf16>, vector<32x8xbf16>, vector<128x8xf32> -> vector<128x8xf32>
    %65 = vector.broadcast %4 : vector<1x8xf32> to vector<128x8xf32>
    %66 = arith.addf %64, %65 : vector<128x8xf32>
    %cst_28 = arith.constant 0.000000e+00 : f32
    %67 = vector.broadcast %cst_28 : f32 to vector<128x8xf32>
    %68 = arith.maximumf %66, %67 : vector<128x8xf32>
    %69 = arith.truncf %68 : vector<128x8xf32> to vector<128x8xbf16>
    %70 = vector.extract_strided_slice %33 {offsets = [1, 0, 0], sizes = [8, 16, 8], strides = [1, 1, 1]} : vector<10x16x8xbf16> to vector<8x16x8xbf16>
    %71 = vector.shape_cast %70 : vector<8x16x8xbf16> to vector<128x8xbf16>
    %72 = vector.extract_strided_slice %34 {offsets = [1, 0, 0], sizes = [8, 16, 8], strides = [1, 1, 1]} : vector<10x16x8xbf16> to vector<8x16x8xbf16>
    %73 = vector.shape_cast %72 : vector<8x16x8xbf16> to vector<128x8xbf16>
    %74 = vector.extract_strided_slice %33 {offsets = [2, 0, 0], sizes = [8, 16, 8], strides = [1, 1, 1]} : vector<10x16x8xbf16> to vector<8x16x8xbf16>
    %75 = vector.shape_cast %74 : vector<8x16x8xbf16> to vector<128x8xbf16>
    %76 = vector.extract_strided_slice %34 {offsets = [2, 0, 0], sizes = [8, 16, 8], strides = [1, 1, 1]} : vector<10x16x8xbf16> to vector<8x16x8xbf16>
    %77 = vector.shape_cast %76 : vector<8x16x8xbf16> to vector<128x8xbf16>
    %78 = tpu.concatenate %71, %73, %75, %77 in 1 : vector<128x8xbf16>, vector<128x8xbf16>, vector<128x8xbf16>, vector<128x8xbf16> -> vector<128x32xbf16>
    %79 = vector.extract_strided_slice %2 {offsets = [2, 0, 0], sizes = [1, 32, 8], strides = [1, 1, 1]} : vector<4x32x8xbf16> to vector<1x32x8xbf16>
    %80 = vector.shape_cast %79 : vector<1x32x8xbf16> to vector<32x8xbf16>
    %cst_29 = arith.constant dense<0.000000e+00> : vector<128x8xf32>
    %81 = tpu.matmul %78, %80, %cst_29 {dimension_numbers = #tpu.dot_dimension_numbers<[1], [0], [0], [1], [0, 0, 1, 1], [], []>} : vector<128x32xbf16>, vector<32x8xbf16>, vector<128x8xf32> -> vector<128x8xf32>
    %82 = vector.broadcast %4 : vector<1x8xf32> to vector<128x8xf32>
    %83 = arith.addf %81, %82 : vector<128x8xf32>
    %cst_30 = arith.constant 0.000000e+00 : f32
    %84 = vector.broadcast %cst_30 : f32 to vector<128x8xf32>
    %85 = arith.maximumf %83, %84 : vector<128x8xf32>
    %86 = arith.truncf %85 : vector<128x8xf32> to vector<128x8xbf16>
    %87 = vector.extract_strided_slice %34 {offsets = [1, 0, 0], sizes = [8, 16, 8], strides = [1, 1, 1]} : vector<10x16x8xbf16> to vector<8x16x8xbf16>
    %88 = vector.shape_cast %87 : vector<8x16x8xbf16> to vector<128x8xbf16>
    %89 = vector.extract_strided_slice %35 {offsets = [1, 0, 0], sizes = [8, 16, 8], strides = [1, 1, 1]} : vector<10x16x8xbf16> to vector<8x16x8xbf16>
    %90 = vector.shape_cast %89 : vector<8x16x8xbf16> to vector<128x8xbf16>
    %91 = vector.extract_strided_slice %34 {offsets = [2, 0, 0], sizes = [8, 16, 8], strides = [1, 1, 1]} : vector<10x16x8xbf16> to vector<8x16x8xbf16>
    %92 = vector.shape_cast %91 : vector<8x16x8xbf16> to vector<128x8xbf16>
    %93 = vector.extract_strided_slice %35 {offsets = [2, 0, 0], sizes = [8, 16, 8], strides = [1, 1, 1]} : vector<10x16x8xbf16> to vector<8x16x8xbf16>
    %94 = vector.shape_cast %93 : vector<8x16x8xbf16> to vector<128x8xbf16>
    %95 = tpu.concatenate %88, %90, %92, %94 in 1 : vector<128x8xbf16>, vector<128x8xbf16>, vector<128x8xbf16>, vector<128x8xbf16> -> vector<128x32xbf16>
    %96 = vector.extract_strided_slice %2 {offsets = [3, 0, 0], sizes = [1, 32, 8], strides = [1, 1, 1]} : vector<4x32x8xbf16> to vector<1x32x8xbf16>
    %97 = vector.shape_cast %96 : vector<1x32x8xbf16> to vector<32x8xbf16>
    %cst_31 = arith.constant dense<0.000000e+00> : vector<128x8xf32>
    %98 = tpu.matmul %95, %97, %cst_31 {dimension_numbers = #tpu.dot_dimension_numbers<[1], [0], [0], [1], [0, 0, 1, 1], [], []>} : vector<128x32xbf16>, vector<32x8xbf16>, vector<128x8xf32> -> vector<128x8xf32>
    %99 = vector.broadcast %4 : vector<1x8xf32> to vector<128x8xf32>
    %100 = arith.addf %98, %99 : vector<128x8xf32>
    %cst_32 = arith.constant 0.000000e+00 : f32
    %101 = vector.broadcast %cst_32 : f32 to vector<128x8xf32>
    %102 = arith.maximumf %100, %101 : vector<128x8xf32>
    %103 = arith.truncf %102 : vector<128x8xf32> to vector<128x8xbf16>
    %104 = tpu.concatenate %52, %69, %86, %103 in 0 : vector<128x8xbf16>, vector<128x8xbf16>, vector<128x8xbf16>, vector<128x8xbf16> -> vector<512x8xbf16>
    %cst_33 = arith.constant dense<0.000000e+00> : vector<512x16xf32>
    %105 = tpu.matmul %104, %1, %cst_33 {dimension_numbers = #tpu.dot_dimension_numbers<[1], [0], [0], [1], [0, 0, 1, 1], [], []>} : vector<512x8xbf16>, vector<8x16xbf16>, vector<512x16xf32> -> vector<512x16xf32>
    %106 = vector.broadcast %5 : vector<1x16xf32> to vector<512x16xf32>
    %107 = arith.addf %105, %106 : vector<512x16xf32>
    %cst_34 = arith.constant 0.000000e+00 : f32
    %108 = vector.broadcast %cst_34 : f32 to vector<512x16xf32>
    %109 = arith.maximumf %107, %108 : vector<512x16xf32>
    %110 = vector.shape_cast %109 : vector<512x16xf32> to vector<4x128x16xf32>
    %c0_35 = arith.constant 0 : index
    %c0_36 = arith.constant 0 : index
    %c0_37 = arith.constant 0 : index
    %c0_38 = arith.constant 0 : index
    %111 = vector.load %arg10[%c0_35, %c0_36, %c0_37, %c0_38] : memref<1x4x128x16xf32, #tpu.memory_space<vmem>>, vector<1x4x128x16xf32>
    %112 = vector.shape_cast %111 : vector<1x4x128x16xf32> to vector<4x128x16xf32>
    %113 = vector.shape_cast %110 : vector<4x128x16xf32> to vector<1x4x128x16xf32>
    tpu.vector_store %arg10[%c0_35, %c0_36, %c0_37, %c0_38], %113 {strides = array<i32>} : memref<1x4x128x16xf32, #tpu.memory_space<vmem>>, vector<1x4x128x16xf32>,
    return
  }
  func.func @transform_0(%arg0: i32, %arg1: i32) -> (i32, i32, i32, i32) {
    %c0_i32 = arith.constant 0 : i32
    %c0_i32_0 = arith.constant 0 : i32
    %c0_i32_1 = arith.constant 0 : i32
    return %arg0, %arg1, %c0_i32, %c0_i32_0 : i32, i32, i32, i32
  }
  func.func @transform_1(%arg0: i32, %arg1: i32) -> (i32, i32, i32, i32, i32) {
    %c0_i32 = arith.constant 0 : i32
    %c0_i32_0 = arith.constant 0 : i32
    %c0_i32_1 = arith.constant 0 : i32
    %c0_i32_2 = arith.constant 0 : i32
    return %arg0, %arg1, %c0_i32, %c0_i32_0, %c0_i32_1 : i32, i32, i32, i32, i32
  }
  func.func @transform_2(%arg0: i32, %arg1: i32) -> (i32, i32) {
    %c0_i32 = arith.constant 0 : i32
    %c0_i32_0 = arith.constant 0 : i32
    %c0_i32_1 = arith.constant 0 : i32
    return %c0_i32, %c0_i32_0 : i32, i32
  }
  func.func @transform_3(%arg0: i32, %arg1: i32) -> (i32, i32) {
    %c0_i32 = arith.constant 0 : i32
    %c0_i32_0 = arith.constant 0 : i32
    %c0_i32_1 = arith.constant 0 : i32
    return %c0_i32, %c0_i32_0 : i32, i32
  }
  func.func @transform_4(%arg0: i32, %arg1: i32) -> (i32, i32, i32) {
    %c0_i32 = arith.constant 0 : i32
    %c0_i32_0 = arith.constant 0 : i32
    %c0_i32_1 = arith.constant 0 : i32
    %c0_i32_2 = arith.constant 0 : i32
    return %c0_i32, %c0_i32_0, %c0_i32_1 : i32, i32, i32
  }
  func.func @transform_5(%arg0: i32, %arg1: i32) -> (i32, i32) {
    %c0_i32 = arith.constant 0 : i32
    %c0_i32_0 = arith.constant 0 : i32
    %c0_i32_1 = arith.constant 0 : i32
    return %c0_i32, %c0_i32_0 : i32, i32
  }
  func.func @transform_6(%arg0: i32, %arg1: i32) -> (i32, i32) {
    %c0_i32 = arith.constant 0 : i32
    %c0_i32_0 = arith.constant 0 : i32
    %c0_i32_1 = arith.constant 0 : i32
    return %c0_i32, %c0_i32_0 : i32, i32
  }
  func.func @transform_7(%arg0: i32, %arg1: i32) -> (i32, i32) {
    %c0_i32 = arith.constant 0 : i32
    %c0_i32_0 = arith.constant 0 : i32
    %c0_i32_1 = arith.constant 0 : i32
    return %c0_i32, %c0_i32_0 : i32, i32
  }
  func.func @transform_8(%arg0: i32, %arg1: i32) -> (i32, i32, i32, i32) {
    %c0_i32 = arith.constant 0 : i32
    %c0_i32_0 = arith.constant 0 : i32
    %c0_i32_1 = arith.constant 0 : i32
    return %arg0, %c0_i32, %arg1, %c0_i32_0 : i32, i32, i32, i32
  }
}

</mosaic_0001>

<llo_original>
// kernel: tpu_custom_call.1
$region0: #{tpu_custom_call.1}
  #allocation0 [shape = 'u32[]', space=smem, size = 0x4, offset = 0x4, fixed_abs, tag = 'smem constant byte address 0x4 - core index']
  #allocation1 [shape = 'u32[72,128]{1,0:T(1,128)}', space=vmem, size = 0x9000, scoped, tag = 'internal scratch']
  %s0 = inlined_call_operand.hbm [shape: bf16[2,16,16,32], index: 0, kind: input, shape index: {}]
  %s1 = inlined_call_operand.vmem [shape: bf16[2,2,2,16,32], index: 1, kind: input, shape index: {}]
  %s2 = inlined_call_operand.vmem [shape: bf16[32,8], index: 2, kind: input, shape index: {}]
  %s3 = inlined_call_operand.vmem [shape: f32[1,8], index: 3, kind: input, shape index: {}]
  %s4 = inlined_call_operand.vmem [shape: bf16[4,32,8], index: 4, kind: input, shape index: {}]
  %s5 = inlined_call_operand.vmem [shape: f32[1,8], index: 5, kind: input, shape index: {}]
  %s6 = inlined_call_operand.vmem [shape: bf16[8,16], index: 6, kind: input, shape index: {}]
  %s7 = inlined_call_operand.vmem [shape: f32[1,16], index: 7, kind: input, shape index: {}]
  %s8 = inlined_call_operand.vmem [shape: f32[2,4,256,16], index: 8, kind: output, shape index: {}]
  %s9 = sld [smem:[#allocation0]]
  $region103: #{tpu_custom_call.1} parent=0
    _
  %s11 = ssub.s32 1, %s9
  %s12 = scalar_select 0, %s11, %s9
  $region1: #{tpu_custom_call.1} parent=0
    #allocation2 [shape = 'u8[65536]{0}', space=vmem, size = 0x10000, scoped, tag = 'input window, operand 0']
    #allocation3 [shape = 's32[2]{0}', space=sflag, size = 0x8, scoped, tag = 'scoped memory for tpu_custom_call.1']
    #allocation4 [shape = 'u8[524288]{0}', space=vmem, size = 0x80000, scoped, tag = 'output window, operand 0']
    %13 = vsyncpa [#allocation3], 0
    %s14 = scalar_lea.sflag [#allocation3], 1
    %15 = vsyncpa %s14, 0
    loop: start=0, step=1, limit=6
    $region2: #{tpu_custom_call.1} parent=1 // loop_pre_header
      _
    $region3: #{tpu_custom_call.1} parent=1 // loop_header
      %s17 = sphi 0, %s21
      %p18 = scmp.ge.s32.totalorder %s17, 6
      %s24 = sphi 0, %s36
      %s25 = sphi 0, %s32
      %s26 = sphi 0, %s24
      %s27 = sphi 0, %s25
      %s28 = sphi 0, %s26
      %s29 = sphi 0, %s27
      %s41 = sphi 0, %s43
      %s44 = sphi 0, %s41
      %s45 = sphi 0, %s44
      %s61 = sphi 0, %s45
      %s69 = sphi 0, %s71
      %s72 = sphi 0, %s69
      %s73 = sphi 0, %s72
      %s89 = sphi 0, %s73
      %s93 = sphi 0, %s93
      %s95 = sphi 0, %s93
      %s96 = sphi 0, %s95
      %s110 = sphi 0, %s96
      %s114 = sphi 0, %s114
      %s116 = sphi 0, %s114
      %s117 = sphi 0, %s116
      %s131 = sphi 0, %s117
      %s135 = sphi 0, %s135
      %s137 = sphi 0, %s135
      %s138 = sphi 0, %s137
      %s152 = sphi 0, %s138
      %s156 = sphi 0, %s156
      %s158 = sphi 0, %s156
      %s159 = sphi 0, %s158
      %s173 = sphi 0, %s159
      %s177 = sphi 0, %s177
      %s179 = sphi 0, %s177
      %s180 = sphi 0, %s179
      %s194 = sphi 0, %s180
      %s198 = sphi 0, %s198
      %s200 = sphi 0, %s198
      %s201 = sphi 0, %s200
      %s215 = sphi 0, %s201
      %s223 = sphi 0, %s225
      %s226 = sphi 0, %s223
      %s227 = sphi 0, %s226
      %s243 = sphi 0, %s227
    $region4: #{tpu_custom_call.1} parent=1 // loop_header_branch
      %20 = sbr.rel (%p18) target = $region8
    $region5: #{tpu_custom_call.1} parent=1 // loop_body
      %s22 = ssub.s32 %s17, 1
      %s23 = ssub.s32 %s17, 2
      %s30 = sadd.s32 1, %s25
      %p31 = scmp.ge.s32.totalorder %s30, 2
      %s32 = scalar_select %p31, 0, %s30
      %s33 = sadd.s32 1, %s24
      %s34 = scalar_select %p31, %s33, %s24
      %p35 = scmp.ge.s32.totalorder %s34, 2
      %s36 = scalar_select %p35, 0, %s34
      %s37 = ssub.s32 %s24, %s36
      %s38 = ssub.s32 %s25, %s32
      %s39 = sor.u32 %s37, %s38
      %p40 = scmp.eq.s32.totalorder %s39, 0
      %s42 = sadd.s32 %s41, 1
      %s43 = scalar_select %p40, %s41, %s42
      %p46 = pneg %p40
      %p47 = scmp.eq.s32.totalorder %s17, 3
      %p48 = por %p46, %p47
      %p49 = scmp.ne.s32.totalorder %s41, %s44
      %p50 = scmp.eq.s32.totalorder %s17, 0
      %p51 = por %p49, %p50
      %p52 = scmp.ne.s32.totalorder %s41, %s44
      %p53 = scmp.eq.s32.totalorder %s22, 3
      %p54 = por %p52, %p53
      %p55 = scmp.ne.s32.totalorder %s44, %s45
      %p56 = scmp.eq.s32.totalorder %s22, 0
      %p57 = por %p55, %p56
      %p58 = scmp.ne.s32.totalorder %s44, %s45
      %p59 = scmp.eq.s32.totalorder %s23, 3
      %p60 = por %p58, %p59
      %p62 = scmp.ne.s32.totalorder %s45, %s61
      %p63 = scmp.eq.s32.totalorder %s23, 0
      %p64 = por %p62, %p63
      %s65 = ssub.s32 %s24, %s36
      %s66 = ssub.s32 %s25, %s32
      %s67 = sor.u32 %s65, %s66
      %p68 = scmp.eq.s32.totalorder %s67, 0
      %s70 = sadd.s32 %s69, 1
      %s71 = scalar_select %p68, %s69, %s70
      %p74 = pneg %p68
      %p75 = scmp.eq.s32.totalorder %s17, 3
      %p76 = por %p74, %p75
      %p77 = scmp.ne.s32.totalorder %s69, %s72
      %p78 = scmp.eq.s32.totalorder %s17, 0
      %p79 = por %p77, %p78
      %p80 = scmp.ne.s32.totalorder %s69, %s72
      %p81 = scmp.eq.s32.totalorder %s22, 3
      %p82 = por %p80, %p81
      %p83 = scmp.ne.s32.totalorder %s72, %s73
      %p84 = scmp.eq.s32.totalorder %s22, 0
      %p85 = por %p83, %p84
      %p86 = scmp.ne.s32.totalorder %s72, %s73
      %p87 = scmp.eq.s32.totalorder %s23, 3
      %p88 = por %p86, %p87
      %p90 = scmp.ne.s32.totalorder %s73, %s89
      %p91 = scmp.eq.s32.totalorder %s23, 0
      %p92 = por %p90, %p91
      %s94 = sadd.s32 %s93, 1
      %p97 = scmp.eq.s32.totalorder %s17, 3
      %p98 = scmp.ne.s32.totalorder %s93, %s95
      %p99 = scmp.eq.s32.totalorder %s17, 0
      %p100 = por %p98, %p99
      %p101 = scmp.ne.s32.totalorder %s93, %s95
      %p102 = scmp.eq.s32.totalorder %s22, 3
      %p103 = por %p101, %p102
      %p104 = scmp.ne.s32.totalorder %s95, %s96
      %p105 = scmp.eq.s32.totalorder %s22, 0
      %p106 = por %p104, %p105
      %p107 = scmp.ne.s32.totalorder %s95, %s96
      %p108 = scmp.eq.s32.totalorder %s23, 3
      %p109 = por %p107, %p108
      %p111 = scmp.ne.s32.totalorder %s96, %s110
      %p112 = scmp.eq.s32.totalorder %s23, 0
      %p113 = por %p111, %p112
      %s115 = sadd.s32 %s114, 1
      %p118 = scmp.eq.s32.totalorder %s17, 3
      %p119 = scmp.ne.s32.totalorder %s114, %s116
      %p120 = scmp.eq.s32.totalorder %s17, 0
      %p121 = por %p119, %p120
      %p122 = scmp.ne.s32.totalorder %s114, %s116
      %p123 = scmp.eq.s32.totalorder %s22, 3
      %p124 = por %p122, %p123
      %p125 = scmp.ne.s32.totalorder %s116, %s117
      %p126 = scmp.eq.s32.totalorder %s22, 0
      %p127 = por %p125, %p126
      %p128 = scmp.ne.s32.totalorder %s116, %s117
      %p129 = scmp.eq.s32.totalorder %s23, 3
      %p130 = por %p128, %p129
      %p132 = scmp.ne.s32.totalorder %s117, %s131
      %p133 = scmp.eq.s32.totalorder %s23, 0
      %p134 = por %p132, %p133
      %s136 = sadd.s32 %s135, 1
      %p139 = scmp.eq.s32.totalorder %s17, 3
      %p140 = scmp.ne.s32.totalorder %s135, %s137
      %p141 = scmp.eq.s32.totalorder %s17, 0
      %p142 = por %p140, %p141
      %p143 = scmp.ne.s32.totalorder %s135, %s137
      %p144 = scmp.eq.s32.totalorder %s22, 3
      %p145 = por %p143, %p144
      %p146 = scmp.ne.s32.totalorder %s137, %s138
      %p147 = scmp.eq.s32.totalorder %s22, 0
      %p148 = por %p146, %p147
      %p149 = scmp.ne.s32.totalorder %s137, %s138
      %p150 = scmp.eq.s32.totalorder %s23, 3
      %p151 = por %p149, %p150
      %p153 = scmp.ne.s32.totalorder %s138, %s152
      %p154 = scmp.eq.s32.totalorder %s23, 0
      %p155 = por %p153, %p154
      %s157 = sadd.s32 %s156, 1
      %p160 = scmp.eq.s32.totalorder %s17, 3
      %p161 = scmp.ne.s32.totalorder %s156, %s158
      %p162 = scmp.eq.s32.totalorder %s17, 0
      %p163 = por %p161, %p162
      %p164 = scmp.ne.s32.totalorder %s156, %s158
      %p165 = scmp.eq.s32.totalorder %s22, 3
      %p166 = por %p164, %p165
      %p167 = scmp.ne.s32.totalorder %s158, %s159
      %p168 = scmp.eq.s32.totalorder %s22, 0
      %p169 = por %p167, %p168
      %p170 = scmp.ne.s32.totalorder %s158, %s159
      %p171 = scmp.eq.s32.totalorder %s23, 3
      %p172 = por %p170, %p171
      %p174 = scmp.ne.s32.totalorder %s159, %s173
      %p175 = scmp.eq.s32.totalorder %s23, 0
      %p176 = por %p174, %p175
      %s178 = sadd.s32 %s177, 1
      %p181 = scmp.eq.s32.totalorder %s17, 3
      %p182 = scmp.ne.s32.totalorder %s177, %s179
      %p183 = scmp.eq.s32.totalorder %s17, 0
      %p184 = por %p182, %p183
      %p185 = scmp.ne.s32.totalorder %s177, %s179
      %p186 = scmp.eq.s32.totalorder %s22, 3
      %p187 = por %p185, %p186
      %p188 = scmp.ne.s32.totalorder %s179, %s180
      %p189 = scmp.eq.s32.totalorder %s22, 0
      %p190 = por %p188, %p189
      %p191 = scmp.ne.s32.totalorder %s179, %s180
      %p192 = scmp.eq.s32.totalorder %s23, 3
      %p193 = por %p191, %p192
      %p195 = scmp.ne.s32.totalorder %s180, %s194
      %p196 = scmp.eq.s32.totalorder %s23, 0
      %p197 = por %p195, %p196
      %s199 = sadd.s32 %s198, 1
      %p202 = scmp.eq.s32.totalorder %s17, 3
      %p203 = scmp.ne.s32.totalorder %s198, %s200
      %p204 = scmp.eq.s32.totalorder %s17, 0
      %p205 = por %p203, %p204
      %p206 = scmp.ne.s32.totalorder %s198, %s200
      %p207 = scmp.eq.s32.totalorder %s22, 3
      %p208 = por %p206, %p207
      %p209 = scmp.ne.s32.totalorder %s200, %s201
      %p210 = scmp.eq.s32.totalorder %s22, 0
      %p211 = por %p209, %p210
      %p212 = scmp.ne.s32.totalorder %s200, %s201
      %p213 = scmp.eq.s32.totalorder %s23, 3
      %p214 = por %p212, %p213
      %p216 = scmp.ne.s32.totalorder %s201, %s215
      %p217 = scmp.eq.s32.totalorder %s23, 0
      %p218 = por %p216, %p217
      %s219 = ssub.s32 %s24, %s36
      %s220 = ssub.s32 %s25, %s32
      %s221 = sor.u32 %s219, %s220
      %p222 = scmp.eq.s32.totalorder %s221, 0
      %s224 = sadd.s32 %s223, 1
      %s225 = scalar_select %p222, %s223, %s224
      %p228 = pneg %p222
      %p229 = scmp.eq.s32.totalorder %s17, 3
      %p230 = por %p228, %p229
      %p231 = scmp.ne.s32.totalorder %s223, %s226
      %p232 = scmp.eq.s32.totalorder %s17, 0
      %p233 = por %p231, %p232
      %p234 = scmp.ne.s32.totalorder %s223, %s226
      %p235 = scmp.eq.s32.totalorder %s22, 3
      %p236 = por %p234, %p235
      %p237 = scmp.ne.s32.totalorder %s226, %s227
      %p238 = scmp.eq.s32.totalorder %s22, 0
      %p239 = por %p237, %p238
      %p240 = scmp.ne.s32.totalorder %s226, %s227
      %p241 = scmp.eq.s32.totalorder %s23, 3
      %p242 = por %p240, %p241
      %p244 = scmp.ne.s32.totalorder %s227, %s243
      %p245 = scmp.eq.s32.totalorder %s23, 0
      %p246 = por %p244, %p245
      %p247 = scmp.le.s32.totalorder 1, %s17
      %p248 = scmp.lt.s32.totalorder %s17, 5
      %p249 = pnand %p247, %p248
      %p250 = pneg %p249
      // Predicated region
      $region9: #{tpu_custom_call.1} parent=5 // pred_check
        _
      $region10: #{tpu_custom_call.1} parent=5 // pred_check_branch
        %252 = sbr.rel (%p249) target = $region12
      $region11: #{tpu_custom_call.1} parent=5 // pred_region
        %s253 = ssub.s32 %s17, 1
        // Predicated region
        $region13: #{tpu_custom_call.1} parent=11 // pred_check
          %p254 = pneg %p106
        $region14: #{tpu_custom_call.1} parent=11 // pred_check_branch
          %256 = sbr.rel (%p254) target = $region16
        $region15: #{tpu_custom_call.1} parent=11 // pred_region
          _
        $region16: #{tpu_custom_call.1} parent=11 // pred_fallthru
          _
        // Predicated region
        $region17: #{tpu_custom_call.1} parent=11 // pred_check
          %p257 = pneg %p127
        $region18: #{tpu_custom_call.1} parent=11 // pred_check_branch
          %259 = sbr.rel (%p257) target = $region20
        $region19: #{tpu_custom_call.1} parent=11 // pred_region
          _
        $region20: #{tpu_custom_call.1} parent=11 // pred_fallthru
          _
        // Predicated region
        $region21: #{tpu_custom_call.1} parent=11 // pred_check
          %p260 = pneg %p148
        $region22: #{tpu_custom_call.1} parent=11 // pred_check_branch
          %262 = sbr.rel (%p260) target = $region24
        $region23: #{tpu_custom_call.1} parent=11 // pred_region
          _
        $region24: #{tpu_custom_call.1} parent=11 // pred_fallthru
          _
        // Predicated region
        $region25: #{tpu_custom_call.1} parent=11 // pred_check
          %p263 = pneg %p169
        $region26: #{tpu_custom_call.1} parent=11 // pred_check_branch
          %265 = sbr.rel (%p263) target = $region28
        $region27: #{tpu_custom_call.1} parent=11 // pred_region
          _
        $region28: #{tpu_custom_call.1} parent=11 // pred_fallthru
          _
        // Predicated region
        $region29: #{tpu_custom_call.1} parent=11 // pred_check
          %p266 = pneg %p190
        $region30: #{tpu_custom_call.1} parent=11 // pred_check_branch
          %268 = sbr.rel (%p266) target = $region32
        $region31: #{tpu_custom_call.1} parent=11 // pred_region
          _
        $region32: #{tpu_custom_call.1} parent=11 // pred_fallthru
          _
        // Predicated region
        $region33: #{tpu_custom_call.1} parent=11 // pred_check
          %p269 = pneg %p211
        $region34: #{tpu_custom_call.1} parent=11 // pred_check_branch
          %271 = sbr.rel (%p269) target = $region36
        $region35: #{tpu_custom_call.1} parent=11 // pred_region
          _
        $region36: #{tpu_custom_call.1} parent=11 // pred_fallthru
          _
      $region12: #{tpu_custom_call.1} parent=5 // pred_fallthru
        _
      %p272 = scmp.lt.s32.totalorder %s17, 4
      // Predicated region
      $region37: #{tpu_custom_call.1} parent=5 // pred_check
        %p273 = pneg %p272
      $region38: #{tpu_custom_call.1} parent=5 // pred_check_branch
        %275 = sbr.rel (%p273) target = $region40
      $region39: #{tpu_custom_call.1} parent=5 // pred_region
        // Predicated region
        $region41: #{tpu_custom_call.1} parent=39 // pred_check
          %p276 = pneg %p51
        $region42: #{tpu_custom_call.1} parent=39 // pred_check_branch
          %278 = sbr.rel (%p276) target = $region44
        $region43: #{tpu_custom_call.1} parent=39 // pred_region
          %s279 = sand.u32 %s41, 1
          %s280 = scalar_lea.sflag [#allocation3], %s279
          %s281 = sand.u32 %s41, 1
          %s282 = smul.addr %s281, 64
          %s283 = scalar_lea.vmem [#allocation2], %s282
          %s284 = smul.u32 8, %s25
          %286 = vsyncadd %s280, 0
          %s287 = smul.addr %s284, 2
          %s288 = smul.addr %s24, 32
          %s289 = sadd.s32 %s287, %s288
          %s290 = smul.addr %s289, 4
          %s291 = scalar_lea.hbm %s0, %s290
          %s292 = sshll.u32 %s291, 4
          %s293 = int_to_ptr.hbm [resolvable:$true] %s292
          %s294 = sshll.u32 %s283, 4
          %s295 = int_to_ptr.vmem [resolvable:$true] %s294
          %300 = dma.hbm_to_vmem [thread:$0]  %s293, 1024, %s295, %s280, 64, 64, 4
        $region44: #{tpu_custom_call.1} parent=39 // pred_fallthru
          _
        // Predicated region
        $region45: #{tpu_custom_call.1} parent=39 // pred_check
          %p301 = pneg %p79
        $region46: #{tpu_custom_call.1} parent=39 // pred_check_branch
          %303 = sbr.rel (%p301) target = $region48
        $region47: #{tpu_custom_call.1} parent=39 // pred_region
          %p304 = scmp.lt.s32.totalorder %s24, 1
          %s305 = scalar_select %p304, %s24, 1
          %p306 = scmp.lt.s32.totalorder %s25, 1
          %s307 = scalar_select %p306, %s25, 1
          %s308 = smul.addr %s307, 4
          %s309 = smul.addr %s305, 8
          %s310 = sadd.s32 %s308, %s309
          %s311 = smul.addr %s310, 4
          %s312 = scalar_lea.vmem %s1, %s311
        $region48: #{tpu_custom_call.1} parent=39 // pred_fallthru
          _
      $region40: #{tpu_custom_call.1} parent=5 // pred_fallthru
        _
      %p313 = scmp.le.s32.totalorder 1, %s17
      %p314 = scmp.lt.s32.totalorder %s17, 5
      %p315 = pnand %p313, %p314
      %p316 = pneg %p315
      // Predicated region
      $region49: #{tpu_custom_call.1} parent=5 // pred_check
        _
      $region50: #{tpu_custom_call.1} parent=5 // pred_check_branch
        %318 = sbr.rel (%p315) target = $region52
      $region51: #{tpu_custom_call.1} parent=5 // pred_region
        %s319 = ssub.s32 %s17, 1
        %s320 = sand.u32 %s44, 1
        %s321 = scalar_lea.sflag [#allocation3], %s320
        %s322 = sand.u32 %s44, 1
        %s323 = smul.addr %s322, 64
        %s324 = scalar_lea.vmem [#allocation2], %s323
        // Predicated region
        $region53: #{tpu_custom_call.1} parent=51 // pred_check
          %p325 = pneg %p57
        $region54: #{tpu_custom_call.1} parent=51 // pred_check_branch
          %327 = sbr.rel (%p325) target = $region56
        $region55: #{tpu_custom_call.1} parent=51 // pred_region
          %329 = dma.done %s321, 1024
        $region56: #{tpu_custom_call.1} parent=51 // pred_fallthru
          _
        %s330 = sand.u32 %s44, 1
        %s331 = scalar_lea.sflag [#allocation3], %s330
        %s332 = sand.u32 %s44, 1
        %s333 = smul.addr %s332, 64
        %s334 = scalar_lea.vmem [#allocation2], %s333
        %p335 = pneg %p57
        %p336 = pneg %p54
        %p337 = scmp.lt.s32.totalorder %s26, 1
        %s338 = scalar_select %p337, %s26, 1
        %p339 = scmp.lt.s32.totalorder %s27, 1
        %s340 = scalar_select %p339, %s27, 1
        %s341 = smul.addr %s340, 4
        %s342 = smul.addr %s338, 8
        %s343 = sadd.s32 %s341, %s342
        %s344 = smul.addr %s343, 4
        %s345 = scalar_lea.vmem %s1, %s344
        %p346 = pneg %p85
        %p347 = pneg %p82
        %p348 = pneg %p106
        %p349 = pneg %p103
        %p350 = pneg %p127
        %p351 = pneg %p124
        %p352 = pneg %p148
        %p353 = pneg %p145
        %p354 = pneg %p169
        %p355 = pneg %p166
        %p356 = pneg %p190
        %p357 = pneg %p187
        %p358 = pneg %p211
        %p359 = pneg %p208
        %p360 = pneg %p239
        %p361 = pneg %p236
        %s362 = sand.u32 %s226, 1
        %s363 = sand.u32 %s226, 1
        %s364 = smul.addr %s363, 512
        %s365 = scalar_lea.vmem [#allocation4], %s364
        %s366 = smul.u32 8, %s27
        %p367 = scmp.lt.s32.totalorder %s26, 1
        %s368 = scalar_select %p367, %s26, 1
        %p369 = scmp.lt.s32.totalorder %s27, 1
        %s370 = scalar_select %p369, %s27, 1
        %s371 = smul.addr %s370, 4
        %s372 = smul.addr %s368, 8
        %s373 = sadd.s32 %s371, %s372
        %s374 = smul.addr %s373, 4
        %s375 = scalar_lea.vmem %s1, %s374
        %s376 = smul.u32 16, %s27
        %v378 = vld [vmem:[%s2] sm:$0xf]
        %v379 = vld [vmem:[%s2 + $0x4] sm:$0xf]
        %v380 = vld [vmem:[%s2 + $0x8] sm:$0xf]
        %v381 = vld [vmem:[%s2 + $0xc] sm:$0xf]
        %v382 = vld [vmem:[%s6] sm:$0xf]
        %v383 = vld [vmem:[%s4] sm:$0xf]
        %v384 = vld [vmem:[%s4 + $0x4] sm:$0xf]
        %v385 = vld [vmem:[%s4 + $0x8] sm:$0xf]
        %v386 = vld [vmem:[%s4 + $0xc] sm:$0xf]
        %v387 = vld [vmem:[%s4 + $0x10] sm:$0xf]
        %v388 = vld [vmem:[%s4 + $0x14] sm:$0xf]
        %v389 = vld [vmem:[%s4 + $0x18] sm:$0xf]
        %v390 = vld [vmem:[%s4 + $0x1c] sm:$0xf]
        %v391 = vld [vmem:[%s4 + $0x20] sm:$0xf]
        %v392 = vld [vmem:[%s4 + $0x24] sm:$0xf]
        %v393 = vld [vmem:[%s4 + $0x28] sm:$0xf]
        %v394 = vld [vmem:[%s4 + $0x2c] sm:$0xf]
        %v395 = vld [vmem:[%s4 + $0x30] sm:$0xf]
        %v396 = vld [vmem:[%s4 + $0x34] sm:$0xf]
        %v397 = vld [vmem:[%s4 + $0x38] sm:$0xf]
        %v398 = vld [vmem:[%s4 + $0x3c] sm:$0xf]
        %v399 = vld [vmem:[%s3] sm:$0x1]
        %v400 = vld [vmem:[%s5] sm:$0x1]
        %v401 = vld [vmem:[%s7] sm:$0x1]
        %v402 = vld [vmem:[%s324] sm:$0xf]
        %v403 = vld [vmem:[%s324 + $0x4] sm:$0xf]
        %v404 = vld [vmem:[%s324 + $0x8] sm:$0xf]
        %v405 = vld [vmem:[%s324 + $0xc] sm:$0xf]
        %v406 = vld [vmem:[%s324 + $0x10] sm:$0xf]
        %v407 = vld [vmem:[%s324 + $0x14] sm:$0xf]
        %v408 = vld [vmem:[%s324 + $0x18] sm:$0xf]
        %v409 = vld [vmem:[%s324 + $0x1c] sm:$0xf]
        %v410 = vld [vmem:[%s324 + $0x20] sm:$0xf]
        %v411 = vld [vmem:[%s324 + $0x24] sm:$0xf]
        %v412 = vld [vmem:[%s324 + $0x28] sm:$0xf]
        %v413 = vld [vmem:[%s324 + $0x2c] sm:$0xf]
        %v414 = vld [vmem:[%s324 + $0x30] sm:$0xf]
        %v415 = vld [vmem:[%s324 + $0x34] sm:$0xf]
        %v416 = vld [vmem:[%s324 + $0x38] sm:$0xf]
        %v417 = vld [vmem:[%s324 + $0x3c] sm:$0xf]
        %v418 = vld [vmem:[%s375] sm:$0xf]
        %v419 = vld [vmem:[%s375 + $0x4] sm:$0xf]
        %v420 = vld [vmem:[%s375 + $0x8] sm:$0xf]
        %v421 = vld [vmem:[%s375 + $0xc] sm:$0xf]
        %v423 = vperm.slane %v399, 0
        %v445 = vunpack.c.l.b16 %v418
        %v446 = vunpack.c.l.b16 %v419
        %v447 = vunpack.c.l.b16 %v402
        %v448 = vunpack.c.l.b16 %v403
        %v449 = vunpack.c.l.b16 %v404
        %v450 = vunpack.c.l.b16 %v405
        %v451 = vunpack.c.l.b16 %v406
        %v452 = vunpack.c.l.b16 %v407
        %v453 = vunpack.c.l.b16 %v408
        %v454 = vunpack.c.l.b16 %v409
        %v455 = vunpack.c.l.b16 %v410
        %v456 = vunpack.c.l.b16 %v411
        %v457 = vunpack.c.l.b16 %v412
        %v458 = vunpack.c.l.b16 %v413
        %v459 = vunpack.c.l.b16 %v414
        %v460 = vunpack.c.l.b16 %v415
        %v461 = vunpack.c.l.b16 %v416
        %v462 = vunpack.c.l.b16 %v417
        %v463 = vunpack.c.l.b16 %v420
        %v464 = vunpack.c.l.b16 %v421
        %v465 = vpack.c.b16 %v446, %v445
        %v466 = vpack.c.b16 %v448, %v447
        %v467 = vpack.c.b16 %v450, %v449
        %v468 = vpack.c.b16 %v452, %v451
        %v469 = vpack.c.b16 %v454, %v453
        %v470 = vpack.c.b16 %v456, %v455
        %v471 = vpack.c.b16 %v458, %v457
        %v472 = vpack.c.b16 %v460, %v459
        %v473 = vpack.c.b16 %v462, %v461
        %v474 = vpack.c.b16 %v464, %v463
        %v479 = vunpack.c.l.b16 %v378
        %v480 = vunpack.c.l.b16 %v379
        %v481 = vunpack.c.l.b16 %v380
        %v482 = vunpack.c.l.b16 %v381
        %v483 = vpack.c.b16 %v480, %v479
        %v484 = vpack.c.b16 %v482, %v481
        %vm487 = vcmask 261120
        %v489 = vsel %vm487, %v465, 0
        %v492 = vsel %vm487, %v466, 0
        %v495 = vsel %vm487, %v467, 0
        %v498 = vsel %vm487, %v468, 0
        %v501 = vsel %vm487, %v469, 0
        %v504 = vsel %vm487, %v470, 0
        %v507 = vsel %vm487, %v471, 0
        %v510 = vsel %vm487, %v472, 0
        %v513 = vsel %vm487, %v473, 0
        %v516 = vsel %vm487, %v474, 0
        %518 = vmatpush.bf16.msra.mxu0 0
        %519 = vmatpush.bf16.msra.mxu0 0
        %520 = vmatpush.bf16.msra.mxu0 0
        %521 = vmatpush.bf16.msra.mxu0 0
        %522 = vmatpush.bf16.msra.mxu0 0
        %523 = vmatpush.bf16.msra.mxu0 0
        %524 = vmatpush.bf16.msra.mxu0 %v484
        %525 = vmatpush.bf16.msra.mxu0 %v483
        %526 = vmatmul.bf16.gmra.mxu0 %v489
        %v527 = vpop.f32.mrf.mxu0
        %v528 = vadd.f32 %v423, %v527
        %v529 = vpop.f32.mrf.mxu0
        %v530 = vadd.f32 %v423, %v529
        %531 = vmatmul.bf16.gmra.mxu0 %v492
        %v532 = vpop.f32.mrf.mxu0
        %v533 = vadd.f32 %v423, %v532
        %v534 = vpop.f32.mrf.mxu0
        %v535 = vadd.f32 %v423, %v534
        %536 = vmatmul.bf16.gmra.mxu0 %v495
        %v537 = vpop.f32.mrf.mxu0
        %v538 = vadd.f32 %v423, %v537
        %v539 = vpop.f32.mrf.mxu0
        %v540 = vadd.f32 %v423, %v539
        %541 = vmatmul.bf16.gmra.mxu0 %v498
        %v542 = vpop.f32.mrf.mxu0
        %v543 = vadd.f32 %v423, %v542
        %v544 = vpop.f32.mrf.mxu0
        %v545 = vadd.f32 %v423, %v544
        %546 = vmatmul.bf16.gmra.mxu0 %v501
        %v547 = vpop.f32.mrf.mxu0
        %v548 = vadd.f32 %v423, %v547
        %v549 = vpop.f32.mrf.mxu0
        %v550 = vadd.f32 %v423, %v549
        %551 = vmatmul.bf16.gmra.mxu0 %v504
        %v552 = vpop.f32.mrf.mxu0
        %v553 = vadd.f32 %v423, %v552
        %v554 = vpop.f32.mrf.mxu0
        %v555 = vadd.f32 %v423, %v554
        %556 = vmatmul.bf16.gmra.mxu0 %v507
        %v557 = vpop.f32.mrf.mxu0
        %v558 = vadd.f32 %v423, %v557
        %v559 = vpop.f32.mrf.mxu0
        %v560 = vadd.f32 %v423, %v559
        %561 = vmatmul.bf16.gmra.mxu0 %v510
        %v562 = vpop.f32.mrf.mxu0
        %v563 = vadd.f32 %v423, %v562
        %v564 = vpop.f32.mrf.mxu0
        %v565 = vadd.f32 %v423, %v564
        %566 = vmatmul.bf16.gmra.mxu0 %v513
        %v567 = vpop.f32.mrf.mxu0
        %v568 = vadd.f32 %v423, %v567
        %v569 = vpop.f32.mrf.mxu0
        %v570 = vadd.f32 %v423, %v569
        %571 = vmatmul.bf16.gmra.mxu0 %v516
        %v572 = vpop.f32.mrf.mxu0
        %v573 = vadd.f32 %v423, %v572
        %v574 = vpop.f32.mrf.mxu0
        %v575 = vadd.f32 %v423, %v574
        %576 = vdwg.mxu0
        %v577 = vmax.f32 %v528, 0.0
        %v578 = vmax.f32 %v530, 0.0
        %v579 = vmax.f32 %v533, 0.0
        %v580 = vmax.f32 %v535, 0.0
        %v581 = vmax.f32 %v538, 0.0
        %v582 = vmax.f32 %v540, 0.0
        %v583 = vmax.f32 %v543, 0.0
        %v584 = vmax.f32 %v545, 0.0
        %v585 = vmax.f32 %v548, 0.0
        %v586 = vmax.f32 %v550, 0.0
        %v587 = vmax.f32 %v553, 0.0
        %v588 = vmax.f32 %v555, 0.0
        %v589 = vmax.f32 %v558, 0.0
        %v590 = vmax.f32 %v560, 0.0
        %v591 = vmax.f32 %v563, 0.0
        %v592 = vmax.f32 %v565, 0.0
        %v593 = vmax.f32 %v568, 0.0
        %v594 = vmax.f32 %v570, 0.0
        %v595 = vmax.f32 %v573, 0.0
        %v596 = vmax.f32 %v575, 0.0
        %v597 = vpack.c.bf16 %v577, %v577
        %v598 = vpack.c.bf16 %v578, %v578
        %v599 = vpack.c.bf16 %v579, %v579
        %v600 = vpack.c.bf16 %v580, %v580
        %v601 = vpack.c.bf16 %v581, %v581
        %v602 = vpack.c.bf16 %v582, %v582
        %v603 = vpack.c.bf16 %v583, %v583
        %v604 = vpack.c.bf16 %v584, %v584
        %v605 = vpack.c.bf16 %v585, %v585
        %v606 = vpack.c.bf16 %v586, %v586
        %v607 = vpack.c.bf16 %v587, %v587
        %v608 = vpack.c.bf16 %v588, %v588
        %v609 = vpack.c.bf16 %v589, %v589
        %v610 = vpack.c.bf16 %v590, %v590
        %v611 = vpack.c.bf16 %v591, %v591
        %v612 = vpack.c.bf16 %v592, %v592
        %v613 = vpack.c.bf16 %v593, %v593
        %v614 = vpack.c.bf16 %v594, %v594
        %v615 = vpack.c.bf16 %v595, %v595
        %v616 = vpack.c.bf16 %v596, %v596
        %p617 = scmp.gt.s32.totalorder %s27, 0
        %s618 = scalar_select %p617, 1, 0
        %v619 = vstv %s618
        %vm620 = vcmp.eq.s32.totalorder %v619, 1
        %v621 = vsel %vm620, %v597, 0
        %v622 = vsel %vm620, %v598, 0
        %p623 = scmp.lt.s32.totalorder %s27, 1
        %s624 = scalar_select %p623, 1, 0
        %v625 = vstv %s624
        %vm626 = vcmp.eq.s32.totalorder %v625, 1
        %v627 = vsel %vm626, %v615, 0
        %v628 = vsel %vm626, %v616, 0
        %v649 = vunpack.c.l.b16 %v621
        %v650 = vunpack.c.l.b16 %v622
        %v651 = vunpack.c.l.b16 %v599
        %v652 = vunpack.c.l.b16 %v600
        %v653 = vunpack.c.l.b16 %v601
        %v654 = vunpack.c.l.b16 %v602
        %v655 = vunpack.c.l.b16 %v603
        %v656 = vunpack.c.l.b16 %v604
        %v657 = vunpack.c.l.b16 %v605
        %v658 = vunpack.c.l.b16 %v606
        %v659 = vunpack.c.l.b16 %v607
        %v660 = vunpack.c.l.b16 %v608
        %v661 = vunpack.c.l.b16 %v609
        %v662 = vunpack.c.l.b16 %v610
        %v663 = vunpack.c.l.b16 %v611
        %v664 = vunpack.c.l.b16 %v612
        %v665 = vunpack.c.l.b16 %v613
        %v666 = vunpack.c.l.b16 %v614
        %v667 = vunpack.c.l.b16 %v627
        %v668 = vunpack.c.l.b16 %v628
        %v669 = vpack.c.b16 %v650, %v649
        %v670 = vpack.c.b16 %v652, %v651
        %v671 = vpack.c.b16 %v654, %v653
        %v672 = vpack.c.b16 %v656, %v655
        %v673 = vpack.c.b16 %v658, %v657
        %v674 = vpack.c.b16 %v660, %v659
        %v675 = vpack.c.b16 %v662, %v661
        %v676 = vpack.c.b16 %v664, %v663
        %v677 = vpack.c.b16 %v666, %v665
        %v678 = vpack.c.b16 %v668, %v667
        %v680 = vshrl.u32 %v669, 16
        %v682 = vrot.slane %v680, 7
        %v683 = vshll.u32 %v669, 16
        %v685 = vor.u32 %v682, %v683
        %v687 = vshrl.u32 %v670, 16
        %v689 = vrot.slane %v687, 7
        %v690 = vshll.u32 %v670, 16
        %v692 = vor.u32 %v689, %v690
        %v694 = vshrl.u32 %v671, 16
        %v696 = vrot.slane %v694, 7
        %v697 = vshll.u32 %v671, 16
        %v699 = vor.u32 %v696, %v697
        %v701 = vshrl.u32 %v672, 16
        %v703 = vrot.slane %v701, 7
        %v704 = vshll.u32 %v672, 16
        %v706 = vor.u32 %v703, %v704
        %v708 = vshrl.u32 %v673, 16
        %v710 = vrot.slane %v708, 7
        %v711 = vshll.u32 %v673, 16
        %v713 = vor.u32 %v710, %v711
        %v715 = vshrl.u32 %v674, 16
        %v717 = vrot.slane %v715, 7
        %v718 = vshll.u32 %v674, 16
        %v720 = vor.u32 %v717, %v718
        %v722 = vshrl.u32 %v675, 16
        %v724 = vrot.slane %v722, 7
        %v725 = vshll.u32 %v675, 16
        %v727 = vor.u32 %v724, %v725
        %v729 = vshrl.u32 %v676, 16
        %v731 = vrot.slane %v729, 7
        %v732 = vshll.u32 %v676, 16
        %v734 = vor.u32 %v731, %v732
        %v736 = vshrl.u32 %v677, 16
        %v738 = vrot.slane %v736, 7
        %v739 = vshll.u32 %v677, 16
        %v741 = vor.u32 %v738, %v739
        %v743 = vshrl.u32 %v678, 16
        %v745 = vrot.slane %v743, 7
        %v746 = vshll.u32 %v678, 16
        %v748 = vor.u32 %v745, %v746
        %vm769 = vcmask 1040384
        %vm770 = vsmask.f32 256
        %vm771 = vmand %vm769, %vm770
        %v772 = vsel %vm771, 0, %v685
        %v773 = vsel %vm771, 0, %v692
        %v774 = vsel %vm771, 0, %v699
        %v775 = vsel %vm771, 0, %v706
        %v776 = vsel %vm771, 0, %v713
        %v777 = vsel %vm771, 0, %v720
        %v778 = vsel %vm771, 0, %v727
        %v779 = vsel %vm771, 0, %v734
        %v780 = vsel %vm771, 0, %v741
        %v781 = vsel %vm771, 0, %v748
        %v782 = vsel %vm771, %v682, 0
        %v783 = vsel %vm771, %v689, 0
        %v784 = vsel %vm771, %v696, 0
        %v785 = vsel %vm771, %v703, 0
        %v786 = vsel %vm771, %v710, 0
        %v787 = vsel %vm771, %v717, 0
        %v788 = vsel %vm771, %v724, 0
        %v789 = vsel %vm771, %v731, 0
        %v790 = vsel %vm771, %v738, 0
        %v791 = vsel %vm771, %v745, 0
        %vm792 = vsmask.f32 7424
        %v794 = vshrl.u32 %v772, 16
        %v796 = vshll.u32 %v772, 16
        %v798 = vrot.slane %v796, 1
        %v799 = vor.u32 %v794, %v798
        %v801 = vshll.u32 %v782, 16
        %v803 = vrot.slane %v801, 1
        %v804 = vsel %vm792, %v799, %v803
        %v806 = vshrl.u32 %v773, 16
        %v808 = vshll.u32 %v773, 16
        %v810 = vrot.slane %v808, 1
        %v811 = vor.u32 %v806, %v810
        %v813 = vshll.u32 %v783, 16
        %v815 = vrot.slane %v813, 1
        %v816 = vsel %vm792, %v811, %v815
        %v818 = vshrl.u32 %v774, 16
        %v820 = vshll.u32 %v774, 16
        %v822 = vrot.slane %v820, 1
        %v823 = vor.u32 %v818, %v822
        %v825 = vshll.u32 %v784, 16
        %v827 = vrot.slane %v825, 1
        %v828 = vsel %vm792, %v823, %v827
        %v830 = vshrl.u32 %v775, 16
        %v832 = vshll.u32 %v775, 16
        %v834 = vrot.slane %v832, 1
        %v835 = vor.u32 %v830, %v834
        %v837 = vshll.u32 %v785, 16
        %v839 = vrot.slane %v837, 1
        %v840 = vsel %vm792, %v835, %v839
        %v842 = vshrl.u32 %v776, 16
        %v844 = vshll.u32 %v776, 16
        %v846 = vrot.slane %v844, 1
        %v847 = vor.u32 %v842, %v846
        %v849 = vshll.u32 %v786, 16
        %v851 = vrot.slane %v849, 1
        %v852 = vsel %vm792, %v847, %v851
        %v854 = vshrl.u32 %v777, 16
        %v856 = vshll.u32 %v777, 16
        %v858 = vrot.slane %v856, 1
        %v859 = vor.u32 %v854, %v858
        %v861 = vshll.u32 %v787, 16
        %v863 = vrot.slane %v861, 1
        %v864 = vsel %vm792, %v859, %v863
        %v866 = vshrl.u32 %v778, 16
        %v868 = vshll.u32 %v778, 16
        %v870 = vrot.slane %v868, 1
        %v871 = vor.u32 %v866, %v870
        %v873 = vshll.u32 %v788, 16
        %v875 = vrot.slane %v873, 1
        %v876 = vsel %vm792, %v871, %v875
        %v878 = vshrl.u32 %v779, 16
        %v880 = vshll.u32 %v779, 16
        %v882 = vrot.slane %v880, 1
        %v883 = vor.u32 %v878, %v882
        %v885 = vshll.u32 %v789, 16
        %v887 = vrot.slane %v885, 1
        %v888 = vsel %vm792, %v883, %v887
        %v890 = vshrl.u32 %v780, 16
        %v892 = vshll.u32 %v780, 16
        %v894 = vrot.slane %v892, 1
        %v895 = vor.u32 %v890, %v894
        %v897 = vshll.u32 %v790, 16
        %v899 = vrot.slane %v897, 1
        %v900 = vsel %vm792, %v895, %v899
        %901 = vrot.lane.b32.xlu0 %v804, 8
        %v902 = vpop.permute.xlu0 %901
        %903 = vrot.lane.b32.xlu0 %v816, 8
        %v904 = vpop.permute.xlu0 %903
        %905 = vrot.lane.b32.xlu0 %v828, 8
        %v906 = vpop.permute.xlu0 %905
        %907 = vrot.lane.b32.xlu0 %v840, 8
        %v908 = vpop.permute.xlu0 %907
        %909 = vrot.lane.b32.xlu0 %v852, 8
        %v910 = vpop.permute.xlu0 %909
        %911 = vrot.lane.b32.xlu0 %v864, 8
        %v912 = vpop.permute.xlu0 %911
        %913 = vrot.lane.b32.xlu0 %v876, 8
        %v914 = vpop.permute.xlu0 %913
        %915 = vrot.lane.b32.xlu0 %v888, 8
        %v916 = vpop.permute.xlu0 %915
        %925 = vrot.lane.b32.xlu0 %v773, 16
        %v926 = vpop.permute.xlu0 %925
        %927 = vrot.lane.b32.xlu0 %v774, 16
        %v928 = vpop.permute.xlu0 %927
        %929 = vrot.lane.b32.xlu0 %v775, 16
        %v930 = vpop.permute.xlu0 %929
        %931 = vrot.lane.b32.xlu0 %v776, 16
        %v932 = vpop.permute.xlu0 %931
        %933 = vrot.lane.b32.xlu0 %v777, 16
        %v934 = vpop.permute.xlu0 %933
        %935 = vrot.lane.b32.xlu0 %v778, 16
        %v936 = vpop.permute.xlu0 %935
        %937 = vrot.lane.b32.xlu0 %v779, 16
        %v938 = vpop.permute.xlu0 %937
        %939 = vrot.lane.b32.xlu0 %v780, 16
        %v940 = vpop.permute.xlu0 %939
        %941 = vrot.lane.b32.xlu0 %v816, 24
        %v942 = vpop.permute.xlu0 %941
        %943 = vrot.lane.b32.xlu0 %v828, 24
        %v944 = vpop.permute.xlu0 %943
        %945 = vrot.lane.b32.xlu0 %v840, 24
        %v946 = vpop.permute.xlu0 %945
        %947 = vrot.lane.b32.xlu0 %v852, 24
        %v948 = vpop.permute.xlu0 %947
        %949 = vrot.lane.b32.xlu0 %v864, 24
        %v950 = vpop.permute.xlu0 %949
        %951 = vrot.lane.b32.xlu0 %v876, 24
        %v952 = vpop.permute.xlu0 %951
        %953 = vrot.lane.b32.xlu0 %v888, 24
        %v954 = vpop.permute.xlu0 %953
        %955 = vrot.lane.b32.xlu0 %v900, 24
        %v956 = vpop.permute.xlu0 %955
        %vm957 = vcmask 64512
        %v959 = vsel %vm957, %v772, %v902
        %v961 = vsel %vm957, %v773, %v904
        %v963 = vsel %vm957, %v774, %v906
        %v965 = vsel %vm957, %v775, %v908
        %v967 = vsel %vm957, %v776, %v910
        %v969 = vsel %vm957, %v777, %v912
        %v971 = vsel %vm957, %v778, %v914
        %v973 = vsel %vm957, %v779, %v916
        %vm974 = vcmask 130048
        %v976 = vsel %vm974, %v959, %v926
        %v978 = vsel %vm974, %v961, %v928
        %v980 = vsel %vm974, %v963, %v930
        %v982 = vsel %vm974, %v965, %v932
        %v984 = vsel %vm974, %v967, %v934
        %v986 = vsel %vm974, %v969, %v936
        %v988 = vsel %vm974, %v971, %v938
        %v990 = vsel %vm974, %v973, %v940
        %vm991 = vcmask 195584
        %v993 = vsel %vm991, %v976, %v942
        %v995 = vsel %vm991, %v978, %v944
        %v997 = vsel %vm991, %v980, %v946
        %v999 = vsel %vm991, %v982, %v948
        %v1001 = vsel %vm991, %v984, %v950
        %v1003 = vsel %vm991, %v986, %v952
        %v1005 = vsel %vm991, %v988, %v954
        %v1007 = vsel %vm991, %v990, %v956
        %v1009 = vperm.slane %v400, 0
        %v1015 = vunpack.c.l.b16 %v383
        %v1016 = vunpack.c.l.b16 %v384
        %v1017 = vunpack.c.l.b16 %v385
        %v1018 = vunpack.c.l.b16 %v386
        %v1019 = vpack.c.b16 %v1016, %v1015
        %v1020 = vpack.c.b16 %v1018, %v1017
        %v1023 = vsel %vm487, %v993, 0
        %v1025 = vsel %vm487, %v995, 0
        %v1027 = vsel %vm487, %v997, 0
        %v1029 = vsel %vm487, %v999, 0
        %v1031 = vsel %vm487, %v1001, 0
        %v1033 = vsel %vm487, %v1003, 0
        %v1035 = vsel %vm487, %v1005, 0
        %v1037 = vsel %vm487, %v1007, 0
        %1039 = vmatpush.bf16.msra.mxu0 0
        %1040 = vmatpush.bf16.msra.mxu0 0
        %1041 = vmatpush.bf16.msra.mxu0 0
        %1042 = vmatpush.bf16.msra.mxu0 0
        %1043 = vmatpush.bf16.msra.mxu0 0
        %1044 = vmatpush.bf16.msra.mxu0 0
        %1045 = vmatpush.bf16.msra.mxu0 %v1020
        %1046 = vmatpush.bf16.msra.mxu0 %v1019
        %1047 = vmatmul.bf16.gmra.mxu0 %v1023
        %v1048 = vpop.f32.mrf.mxu0
        %v1049 = vadd.f32 %v1009, %v1048
        %v1050 = vpop.f32.mrf.mxu0
        %v1051 = vadd.f32 %v1009, %v1050
        %1052 = vmatmul.bf16.gmra.mxu0 %v1025
        %v1053 = vpop.f32.mrf.mxu0
        %v1054 = vadd.f32 %v1009, %v1053
        %v1055 = vpop.f32.mrf.mxu0
        %v1056 = vadd.f32 %v1009, %v1055
        %1057 = vmatmul.bf16.gmra.mxu0 %v1027
        %v1058 = vpop.f32.mrf.mxu0
        %v1059 = vadd.f32 %v1009, %v1058
        %v1060 = vpop.f32.mrf.mxu0
        %v1061 = vadd.f32 %v1009, %v1060
        %1062 = vmatmul.bf16.gmra.mxu0 %v1029
        %v1063 = vpop.f32.mrf.mxu0
        %v1064 = vadd.f32 %v1009, %v1063
        %v1065 = vpop.f32.mrf.mxu0
        %v1066 = vadd.f32 %v1009, %v1065
        %1067 = vmatmul.bf16.gmra.mxu0 %v1031
        %v1068 = vpop.f32.mrf.mxu0
        %v1069 = vadd.f32 %v1009, %v1068
        %v1070 = vpop.f32.mrf.mxu0
        %v1071 = vadd.f32 %v1009, %v1070
        %1072 = vmatmul.bf16.gmra.mxu0 %v1033
        %v1073 = vpop.f32.mrf.mxu0
        %v1074 = vadd.f32 %v1009, %v1073
        %v1075 = vpop.f32.mrf.mxu0
        %v1076 = vadd.f32 %v1009, %v1075
        %1077 = vmatmul.bf16.gmra.mxu0 %v1035
        %v1078 = vpop.f32.mrf.mxu0
        %v1079 = vadd.f32 %v1009, %v1078
        %v1080 = vpop.f32.mrf.mxu0
        %v1081 = vadd.f32 %v1009, %v1080
        %1082 = vmatmul.bf16.gmra.mxu0 %v1037
        %v1083 = vpop.f32.mrf.mxu0
        %v1084 = vadd.f32 %v1009, %v1083
        %v1085 = vpop.f32.mrf.mxu0
        %v1086 = vadd.f32 %v1009, %v1085
        %1087 = vdwg.mxu0
        %v1088 = vmax.f32 %v1049, 0.0
        %v1089 = vmax.f32 %v1051, 0.0
        %v1090 = vmax.f32 %v1054, 0.0
        %v1091 = vmax.f32 %v1056, 0.0
        %v1092 = vmax.f32 %v1059, 0.0
        %v1093 = vmax.f32 %v1061, 0.0
        %v1094 = vmax.f32 %v1064, 0.0
        %v1095 = vmax.f32 %v1066, 0.0
        %v1096 = vmax.f32 %v1069, 0.0
        %v1097 = vmax.f32 %v1071, 0.0
        %v1098 = vmax.f32 %v1074, 0.0
        %v1099 = vmax.f32 %v1076, 0.0
        %v1100 = vmax.f32 %v1079, 0.0
        %v1101 = vmax.f32 %v1081, 0.0
        %v1102 = vmax.f32 %v1084, 0.0
        %v1103 = vmax.f32 %v1086, 0.0
        %v1104 = vpack.c.bf16 %v1088, %v1088
        %v1105 = vpack.c.bf16 %v1089, %v1089
        %v1106 = vpack.c.bf16 %v1090, %v1090
        %v1107 = vpack.c.bf16 %v1091, %v1091
        %v1108 = vpack.c.bf16 %v1092, %v1092
        %v1109 = vpack.c.bf16 %v1093, %v1093
        %v1110 = vpack.c.bf16 %v1094, %v1094
        %v1111 = vpack.c.bf16 %v1095, %v1095
        %v1112 = vpack.c.bf16 %v1096, %v1096
        %v1113 = vpack.c.bf16 %v1097, %v1097
        %v1114 = vpack.c.bf16 %v1098, %v1098
        %v1115 = vpack.c.bf16 %v1099, %v1099
        %v1116 = vpack.c.bf16 %v1100, %v1100
        %v1117 = vpack.c.bf16 %v1101, %v1101
        %v1118 = vpack.c.bf16 %v1102, %v1102
        %v1119 = vpack.c.bf16 %v1103, %v1103
        %vm1129 = vcmask 1046528
        %v1130 = vrot.slane %v772, 1
        %v1131 = vrot.slane %v782, 1
        %v1132 = vsel %vm1129, %v1130, %v1131
        %v1133 = vrot.slane %v773, 1
        %v1134 = vrot.slane %v783, 1
        %v1135 = vsel %vm1129, %v1133, %v1134
        %v1136 = vrot.slane %v774, 1
        %v1137 = vrot.slane %v784, 1
        %v1138 = vsel %vm1129, %v1136, %v1137
        %v1139 = vrot.slane %v775, 1
        %v1140 = vrot.slane %v785, 1
        %v1141 = vsel %vm1129, %v1139, %v1140
        %v1142 = vrot.slane %v776, 1
        %v1143 = vrot.slane %v786, 1
        %v1144 = vsel %vm1129, %v1142, %v1143
        %v1145 = vrot.slane %v777, 1
        %v1146 = vrot.slane %v787, 1
        %v1147 = vsel %vm1129, %v1145, %v1146
        %v1148 = vrot.slane %v778, 1
        %v1149 = vrot.slane %v788, 1
        %v1150 = vsel %vm1129, %v1148, %v1149
        %v1151 = vrot.slane %v779, 1
        %v1152 = vrot.slane %v789, 1
        %v1153 = vsel %vm1129, %v1151, %v1152
        %v1155 = vrot.slane %v780, 1
        %v1156 = vrot.slane %v790, 1
        %v1157 = vsel %vm1129, %v1155, %v1156
        %1158 = vrot.lane.b32.xlu0 %v1132, 8
        %v1159 = vpop.permute.xlu0 %1158
        %1160 = vrot.lane.b32.xlu0 %v1135, 8
        %v1161 = vpop.permute.xlu0 %1160
        %1162 = vrot.lane.b32.xlu0 %v1138, 8
        %v1163 = vpop.permute.xlu0 %1162
        %1164 = vrot.lane.b32.xlu0 %v1141, 8
        %v1165 = vpop.permute.xlu0 %1164
        %1166 = vrot.lane.b32.xlu0 %v1144, 8
        %v1167 = vpop.permute.xlu0 %1166
        %1168 = vrot.lane.b32.xlu0 %v1147, 8
        %v1169 = vpop.permute.xlu0 %1168
        %1170 = vrot.lane.b32.xlu0 %v1150, 8
        %v1171 = vpop.permute.xlu0 %1170
        %1172 = vrot.lane.b32.xlu0 %v1153, 8
        %v1173 = vpop.permute.xlu0 %1172
        %1174 = vrot.lane.b32.xlu0 %v816, 16
        %v1175 = vpop.permute.xlu0 %1174
        %1176 = vrot.lane.b32.xlu0 %v828, 16
        %v1177 = vpop.permute.xlu0 %1176
        %1178 = vrot.lane.b32.xlu0 %v840, 16
        %v1179 = vpop.permute.xlu0 %1178
        %1180 = vrot.lane.b32.xlu0 %v852, 16
        %v1181 = vpop.permute.xlu0 %1180
        %1182 = vrot.lane.b32.xlu0 %v864, 16
        %v1183 = vpop.permute.xlu0 %1182
        %1184 = vrot.lane.b32.xlu0 %v876, 16
        %v1185 = vpop.permute.xlu0 %1184
        %1186 = vrot.lane.b32.xlu0 %v888, 16
        %v1187 = vpop.permute.xlu0 %1186
        %1188 = vrot.lane.b32.xlu0 %v900, 16
        %v1189 = vpop.permute.xlu0 %1188
        %1190 = vrot.lane.b32.xlu0 %v1135, 24
        %v1191 = vpop.permute.xlu0 %1190
        %1192 = vrot.lane.b32.xlu0 %v1138, 24
        %v1193 = vpop.permute.xlu0 %1192
        %1194 = vrot.lane.b32.xlu0 %v1141, 24
        %v1195 = vpop.permute.xlu0 %1194
        %1196 = vrot.lane.b32.xlu0 %v1144, 24
        %v1197 = vpop.permute.xlu0 %1196
        %1198 = vrot.lane.b32.xlu0 %v1147, 24
        %v1199 = vpop.permute.xlu0 %1198
        %1200 = vrot.lane.b32.xlu0 %v1150, 24
        %v1201 = vpop.permute.xlu0 %1200
        %1202 = vrot.lane.b32.xlu0 %v1153, 24
        %v1203 = vpop.permute.xlu0 %1202
        %1204 = vrot.lane.b32.xlu0 %v1157, 24
        %v1205 = vpop.permute.xlu0 %1204
        %v1208 = vsel %vm957, %v804, %v1159
        %v1211 = vsel %vm957, %v816, %v1161
        %v1214 = vsel %vm957, %v828, %v1163
        %v1217 = vsel %vm957, %v840, %v1165
        %v1220 = vsel %vm957, %v852, %v1167
        %v1223 = vsel %vm957, %v864, %v1169
        %v1226 = vsel %vm957, %v876, %v1171
        %v1229 = vsel %vm957, %v888, %v1173
        %v1231 = vsel %vm974, %v1208, %v1175
        %v1233 = vsel %vm974, %v1211, %v1177
        %v1235 = vsel %vm974, %v1214, %v1179
        %v1237 = vsel %vm974, %v1217, %v1181
        %v1239 = vsel %vm974, %v1220, %v1183
        %v1241 = vsel %vm974, %v1223, %v1185
        %v1243 = vsel %vm974, %v1226, %v1187
        %v1245 = vsel %vm974, %v1229, %v1189
        %v1247 = vsel %vm991, %v1231, %v1191
        %v1249 = vsel %vm991, %v1233, %v1193
        %v1251 = vsel %vm991, %v1235, %v1195
        %v1253 = vsel %vm991, %v1237, %v1197
        %v1255 = vsel %vm991, %v1239, %v1199
        %v1257 = vsel %vm991, %v1241, %v1201
        %v1259 = vsel %vm991, %v1243, %v1203
        %v1261 = vsel %vm991, %v1245, %v1205
        %v1266 = vunpack.c.l.b16 %v387
        %v1267 = vunpack.c.l.b16 %v388
        %v1268 = vunpack.c.l.b16 %v389
        %v1269 = vunpack.c.l.b16 %v390
        %v1270 = vpack.c.b16 %v1267, %v1266
        %v1271 = vpack.c.b16 %v1269, %v1268
        %v1274 = vsel %vm487, %v1247, 0
        %v1276 = vsel %vm487, %v1249, 0
        %v1278 = vsel %vm487, %v1251, 0
        %v1280 = vsel %vm487, %v1253, 0
        %v1282 = vsel %vm487, %v1255, 0
        %v1284 = vsel %vm487, %v1257, 0
        %v1286 = vsel %vm487, %v1259, 0
        %v1288 = vsel %vm487, %v1261, 0
        %1290 = vmatpush.bf16.msra.mxu0 0
        %1291 = vmatpush.bf16.msra.mxu0 0
        %1292 = vmatpush.bf16.msra.mxu0 0
        %1293 = vmatpush.bf16.msra.mxu0 0
        %1294 = vmatpush.bf16.msra.mxu0 0
        %1295 = vmatpush.bf16.msra.mxu0 0
        %1296 = vmatpush.bf16.msra.mxu0 %v1271
        %1297 = vmatpush.bf16.msra.mxu0 %v1270
        %1298 = vmatmul.bf16.gmra.mxu0 %v1274
        %v1299 = vpop.f32.mrf.mxu0
        %v1300 = vadd.f32 %v1009, %v1299
        %v1301 = vpop.f32.mrf.mxu0
        %v1302 = vadd.f32 %v1009, %v1301
        %1303 = vmatmul.bf16.gmra.mxu0 %v1276
        %v1304 = vpop.f32.mrf.mxu0
        %v1305 = vadd.f32 %v1009, %v1304
        %v1306 = vpop.f32.mrf.mxu0
        %v1307 = vadd.f32 %v1009, %v1306
        %1308 = vmatmul.bf16.gmra.mxu0 %v1278
        %v1309 = vpop.f32.mrf.mxu0
        %v1310 = vadd.f32 %v1009, %v1309
        %v1311 = vpop.f32.mrf.mxu0
        %v1312 = vadd.f32 %v1009, %v1311
        %1313 = vmatmul.bf16.gmra.mxu0 %v1280
        %v1314 = vpop.f32.mrf.mxu0
        %v1315 = vadd.f32 %v1009, %v1314
        %v1316 = vpop.f32.mrf.mxu0
        %v1317 = vadd.f32 %v1009, %v1316
        %1318 = vmatmul.bf16.gmra.mxu0 %v1282
        %v1319 = vpop.f32.mrf.mxu0
        %v1320 = vadd.f32 %v1009, %v1319
        %v1321 = vpop.f32.mrf.mxu0
        %v1322 = vadd.f32 %v1009, %v1321
        %1323 = vmatmul.bf16.gmra.mxu0 %v1284
        %v1324 = vpop.f32.mrf.mxu0
        %v1325 = vadd.f32 %v1009, %v1324
        %v1326 = vpop.f32.mrf.mxu0
        %v1327 = vadd.f32 %v1009, %v1326
        %1328 = vmatmul.bf16.gmra.mxu0 %v1286
        %v1329 = vpop.f32.mrf.mxu0
        %v1330 = vadd.f32 %v1009, %v1329
        %v1331 = vpop.f32.mrf.mxu0
        %v1332 = vadd.f32 %v1009, %v1331
        %1333 = vmatmul.bf16.gmra.mxu0 %v1288
        %v1334 = vpop.f32.mrf.mxu0
        %v1335 = vadd.f32 %v1009, %v1334
        %v1336 = vpop.f32.mrf.mxu0
        %v1337 = vadd.f32 %v1009, %v1336
        %1338 = vdwg.mxu0
        %v1339 = vmax.f32 %v1300, 0.0
        %v1340 = vmax.f32 %v1302, 0.0
        %v1341 = vmax.f32 %v1305, 0.0
        %v1342 = vmax.f32 %v1307, 0.0
        %v1343 = vmax.f32 %v1310, 0.0
        %v1344 = vmax.f32 %v1312, 0.0
        %v1345 = vmax.f32 %v1315, 0.0
        %v1346 = vmax.f32 %v1317, 0.0
        %v1347 = vmax.f32 %v1320, 0.0
        %v1348 = vmax.f32 %v1322, 0.0
        %v1349 = vmax.f32 %v1325, 0.0
        %v1350 = vmax.f32 %v1327, 0.0
        %v1351 = vmax.f32 %v1330, 0.0
        %v1352 = vmax.f32 %v1332, 0.0
        %v1353 = vmax.f32 %v1335, 0.0
        %v1354 = vmax.f32 %v1337, 0.0
        %v1355 = vpack.c.bf16 %v1339, %v1339
        %v1356 = vpack.c.bf16 %v1340, %v1340
        %v1357 = vpack.c.bf16 %v1341, %v1341
        %v1358 = vpack.c.bf16 %v1342, %v1342
        %v1359 = vpack.c.bf16 %v1343, %v1343
        %v1360 = vpack.c.bf16 %v1344, %v1344
        %v1361 = vpack.c.bf16 %v1345, %v1345
        %v1362 = vpack.c.bf16 %v1346, %v1346
        %v1363 = vpack.c.bf16 %v1347, %v1347
        %v1364 = vpack.c.bf16 %v1348, %v1348
        %v1365 = vpack.c.bf16 %v1349, %v1349
        %v1366 = vpack.c.bf16 %v1350, %v1350
        %v1367 = vpack.c.bf16 %v1351, %v1351
        %v1368 = vpack.c.bf16 %v1352, %v1352
        %v1369 = vpack.c.bf16 %v1353, %v1353
        %v1370 = vpack.c.bf16 %v1354, %v1354
        %v1372 = vshrl.u32 %v781, 16
        %v1374 = vshll.u32 %v781, 16
        %v1376 = vrot.slane %v1374, 1
        %v1377 = vor.u32 %v1372, %v1376
        %v1379 = vshll.u32 %v791, 16
        %v1381 = vrot.slane %v1379, 1
        %v1382 = vsel %vm792, %v1377, %v1381
        %1383 = vrot.lane.b32.xlu0 %v900, 8
        %v1384 = vpop.permute.xlu0 %1383
        %1386 = vrot.lane.b32.xlu0 %v781, 16
        %v1387 = vpop.permute.xlu0 %1386
        %1388 = vrot.lane.b32.xlu0 %v1382, 24
        %v1389 = vpop.permute.xlu0 %1388
        %v1391 = vsel %vm957, %v780, %v1384
        %v1393 = vsel %vm974, %v1391, %v1387
        %v1395 = vsel %vm991, %v1393, %v1389
        %v1400 = vunpack.c.l.b16 %v391
        %v1401 = vunpack.c.l.b16 %v392
        %v1402 = vunpack.c.l.b16 %v393
        %v1403 = vunpack.c.l.b16 %v394
        %v1404 = vpack.c.b16 %v1401, %v1400
        %v1405 = vpack.c.b16 %v1403, %v1402
        %v1408 = vsel %vm487, %v1395, 0
        %1410 = vmatpush.bf16.msra.mxu0 0
        %1411 = vmatpush.bf16.msra.mxu0 0
        %1412 = vmatpush.bf16.msra.mxu0 0
        %1413 = vmatpush.bf16.msra.mxu0 0
        %1414 = vmatpush.bf16.msra.mxu0 0
        %1415 = vmatpush.bf16.msra.mxu0 0
        %1416 = vmatpush.bf16.msra.mxu0 %v1405
        %1417 = vmatpush.bf16.msra.mxu0 %v1404
        %1418 = vmatmul.bf16.gmra.mxu0 %v1025
        %v1419 = vpop.f32.mrf.mxu0
        %v1420 = vadd.f32 %v1009, %v1419
        %v1421 = vpop.f32.mrf.mxu0
        %v1422 = vadd.f32 %v1009, %v1421
        %1423 = vmatmul.bf16.gmra.mxu0 %v1027
        %v1424 = vpop.f32.mrf.mxu0
        %v1425 = vadd.f32 %v1009, %v1424
        %v1426 = vpop.f32.mrf.mxu0
        %v1427 = vadd.f32 %v1009, %v1426
        %1428 = vmatmul.bf16.gmra.mxu0 %v1029
        %v1429 = vpop.f32.mrf.mxu0
        %v1430 = vadd.f32 %v1009, %v1429
        %v1431 = vpop.f32.mrf.mxu0
        %v1432 = vadd.f32 %v1009, %v1431
        %1433 = vmatmul.bf16.gmra.mxu0 %v1031
        %v1434 = vpop.f32.mrf.mxu0
        %v1435 = vadd.f32 %v1009, %v1434
        %v1436 = vpop.f32.mrf.mxu0
        %v1437 = vadd.f32 %v1009, %v1436
        %1438 = vmatmul.bf16.gmra.mxu0 %v1033
        %v1439 = vpop.f32.mrf.mxu0
        %v1440 = vadd.f32 %v1009, %v1439
        %v1441 = vpop.f32.mrf.mxu0
        %v1442 = vadd.f32 %v1009, %v1441
        %1443 = vmatmul.bf16.gmra.mxu0 %v1035
        %v1444 = vpop.f32.mrf.mxu0
        %v1445 = vadd.f32 %v1009, %v1444
        %v1446 = vpop.f32.mrf.mxu0
        %v1447 = vadd.f32 %v1009, %v1446
        %1448 = vmatmul.bf16.gmra.mxu0 %v1037
        %v1449 = vpop.f32.mrf.mxu0
        %v1450 = vadd.f32 %v1009, %v1449
        %v1451 = vpop.f32.mrf.mxu0
        %v1452 = vadd.f32 %v1009, %v1451
        %1453 = vmatmul.bf16.gmra.mxu0 %v1408
        %v1454 = vpop.f32.mrf.mxu0
        %v1455 = vadd.f32 %v1009, %v1454
        %v1456 = vpop.f32.mrf.mxu0
        %v1457 = vadd.f32 %v1009, %v1456
        %1458 = vdwg.mxu0
        %v1459 = vmax.f32 %v1420, 0.0
        %v1460 = vmax.f32 %v1422, 0.0
        %v1461 = vmax.f32 %v1425, 0.0
        %v1462 = vmax.f32 %v1427, 0.0
        %v1463 = vmax.f32 %v1430, 0.0
        %v1464 = vmax.f32 %v1432, 0.0
        %v1465 = vmax.f32 %v1435, 0.0
        %v1466 = vmax.f32 %v1437, 0.0
        %v1467 = vmax.f32 %v1440, 0.0
        %v1468 = vmax.f32 %v1442, 0.0
        %v1469 = vmax.f32 %v1445, 0.0
        %v1470 = vmax.f32 %v1447, 0.0
        %v1471 = vmax.f32 %v1450, 0.0
        %v1472 = vmax.f32 %v1452, 0.0
        %v1473 = vmax.f32 %v1455, 0.0
        %v1474 = vmax.f32 %v1457, 0.0
        %v1475 = vpack.c.bf16 %v1459, %v1459
        %v1476 = vpack.c.bf16 %v1460, %v1460
        %v1477 = vpack.c.bf16 %v1461, %v1461
        %v1478 = vpack.c.bf16 %v1462, %v1462
        %v1479 = vpack.c.bf16 %v1463, %v1463
        %v1480 = vpack.c.bf16 %v1464, %v1464
        %v1481 = vpack.c.bf16 %v1465, %v1465
        %v1482 = vpack.c.bf16 %v1466, %v1466
        %v1483 = vpack.c.bf16 %v1467, %v1467
        %v1484 = vpack.c.bf16 %v1468, %v1468
        %v1485 = vpack.c.bf16 %v1469, %v1469
        %v1486 = vpack.c.bf16 %v1470, %v1470
        %v1487 = vpack.c.bf16 %v1471, %v1471
        %v1488 = vpack.c.bf16 %v1472, %v1472
        %v1489 = vpack.c.bf16 %v1473, %v1473
        %v1490 = vpack.c.bf16 %v1474, %v1474
        %v1492 = vrot.slane %v781, 1
        %v1493 = vrot.slane %v791, 1
        %v1494 = vsel %vm1129, %v1492, %v1493
        %1495 = vrot.lane.b32.xlu0 %v1157, 8
        %v1496 = vpop.permute.xlu0 %1495
        %1497 = vrot.lane.b32.xlu0 %v1382, 16
        %v1498 = vpop.permute.xlu0 %1497
        %1499 = vrot.lane.b32.xlu0 %v1494, 24
        %v1500 = vpop.permute.xlu0 %1499
        %v1503 = vsel %vm957, %v900, %v1496
        %v1505 = vsel %vm974, %v1503, %v1498
        %v1507 = vsel %vm991, %v1505, %v1500
        %v1512 = vunpack.c.l.b16 %v395
        %v1513 = vunpack.c.l.b16 %v396
        %v1514 = vunpack.c.l.b16 %v397
        %v1515 = vunpack.c.l.b16 %v398
        %v1516 = vpack.c.b16 %v1513, %v1512
        %v1517 = vpack.c.b16 %v1515, %v1514
        %v1520 = vsel %vm487, %v1507, 0
        %1522 = vmatpush.bf16.msra.mxu0 0
        %1523 = vmatpush.bf16.msra.mxu0 0
        %1524 = vmatpush.bf16.msra.mxu0 0
        %1525 = vmatpush.bf16.msra.mxu0 0
        %1526 = vmatpush.bf16.msra.mxu0 0
        %1527 = vmatpush.bf16.msra.mxu0 0
        %1528 = vmatpush.bf16.msra.mxu0 %v1517
        %1529 = vmatpush.bf16.msra.mxu0 %v1516
        %1530 = vmatmul.bf16.gmra.mxu0 %v1276
        %v1531 = vpop.f32.mrf.mxu0
        %v1532 = vadd.f32 %v1009, %v1531
        %v1533 = vpop.f32.mrf.mxu0
        %v1534 = vadd.f32 %v1009, %v1533
        %1535 = vmatmul.bf16.gmra.mxu0 %v1278
        %v1536 = vpop.f32.mrf.mxu0
        %v1537 = vadd.f32 %v1009, %v1536
        %v1538 = vpop.f32.mrf.mxu0
        %v1539 = vadd.f32 %v1009, %v1538
        %1540 = vmatmul.bf16.gmra.mxu0 %v1280
        %v1541 = vpop.f32.mrf.mxu0
        %v1542 = vadd.f32 %v1009, %v1541
        %v1543 = vpop.f32.mrf.mxu0
        %v1544 = vadd.f32 %v1009, %v1543
        %1545 = vmatmul.bf16.gmra.mxu0 %v1282
        %v1546 = vpop.f32.mrf.mxu0
        %v1547 = vadd.f32 %v1009, %v1546
        %v1548 = vpop.f32.mrf.mxu0
        %v1549 = vadd.f32 %v1009, %v1548
        %1550 = vmatmul.bf16.gmra.mxu0 %v1284
        %v1551 = vpop.f32.mrf.mxu0
        %v1552 = vadd.f32 %v1009, %v1551
        %v1553 = vpop.f32.mrf.mxu0
        %v1554 = vadd.f32 %v1009, %v1553
        %1555 = vmatmul.bf16.gmra.mxu0 %v1286
        %v1556 = vpop.f32.mrf.mxu0
        %v1557 = vadd.f32 %v1009, %v1556
        %v1558 = vpop.f32.mrf.mxu0
        %v1559 = vadd.f32 %v1009, %v1558
        %1560 = vmatmul.bf16.gmra.mxu0 %v1288
        %v1561 = vpop.f32.mrf.mxu0
        %v1562 = vadd.f32 %v1009, %v1561
        %v1563 = vpop.f32.mrf.mxu0
        %v1564 = vadd.f32 %v1009, %v1563
        %1565 = vmatmul.bf16.gmra.mxu0 %v1520
        %v1566 = vpop.f32.mrf.mxu0
        %v1567 = vadd.f32 %v1009, %v1566
        %v1568 = vpop.f32.mrf.mxu0
        %v1569 = vadd.f32 %v1009, %v1568
        %1570 = vdwg.mxu0
        %v1571 = vmax.f32 %v1532, 0.0
        %v1572 = vmax.f32 %v1534, 0.0
        %v1573 = vmax.f32 %v1537, 0.0
        %v1574 = vmax.f32 %v1539, 0.0
        %v1575 = vmax.f32 %v1542, 0.0
        %v1576 = vmax.f32 %v1544, 0.0
        %v1577 = vmax.f32 %v1547, 0.0
        %v1578 = vmax.f32 %v1549, 0.0
        %v1579 = vmax.f32 %v1552, 0.0
        %v1580 = vmax.f32 %v1554, 0.0
        %v1581 = vmax.f32 %v1557, 0.0
        %v1582 = vmax.f32 %v1559, 0.0
        %v1583 = vmax.f32 %v1562, 0.0
        %v1584 = vmax.f32 %v1564, 0.0
        %v1585 = vmax.f32 %v1567, 0.0
        %v1586 = vmax.f32 %v1569, 0.0
        %v1587 = vpack.c.bf16 %v1571, %v1571
        %v1588 = vpack.c.bf16 %v1572, %v1572
        %v1589 = vpack.c.bf16 %v1573, %v1573
        %v1590 = vpack.c.bf16 %v1574, %v1574
        %v1591 = vpack.c.bf16 %v1575, %v1575
        %v1592 = vpack.c.bf16 %v1576, %v1576
        %v1593 = vpack.c.bf16 %v1577, %v1577
        %v1594 = vpack.c.bf16 %v1578, %v1578
        %v1595 = vpack.c.bf16 %v1579, %v1579
        %v1596 = vpack.c.bf16 %v1580, %v1580
        %v1597 = vpack.c.bf16 %v1581, %v1581
        %v1598 = vpack.c.bf16 %v1582, %v1582
        %v1599 = vpack.c.bf16 %v1583, %v1583
        %v1600 = vpack.c.bf16 %v1584, %v1584
        %v1601 = vpack.c.bf16 %v1585, %v1585
        %v1602 = vpack.c.bf16 %v1586, %v1586
        %v1619 = vunpack.c.l.b16 %v1104
        %v1620 = vunpack.c.l.b16 %v1105
        %v1621 = vunpack.c.l.b16 %v1106
        %v1622 = vunpack.c.l.b16 %v1107
        %v1623 = vunpack.c.l.b16 %v1108
        %v1624 = vunpack.c.l.b16 %v1109
        %v1625 = vunpack.c.l.b16 %v1110
        %v1626 = vunpack.c.l.b16 %v1111
        %v1627 = vunpack.c.l.b16 %v1112
        %v1628 = vunpack.c.l.b16 %v1113
        %v1629 = vunpack.c.l.b16 %v1114
        %v1630 = vunpack.c.l.b16 %v1115
        %v1631 = vunpack.c.l.b16 %v1116
        %v1632 = vunpack.c.l.b16 %v1117
        %v1633 = vunpack.c.l.b16 %v1118
        %v1634 = vunpack.c.l.b16 %v1119
        %v1635 = vpack.c.b16 %v1620, %v1619
        %v1636 = vpack.c.b16 %v1622, %v1621
        %v1637 = vpack.c.b16 %v1624, %v1623
        %v1638 = vpack.c.b16 %v1626, %v1625
        %v1639 = vpack.c.b16 %v1628, %v1627
        %v1640 = vpack.c.b16 %v1630, %v1629
        %v1641 = vpack.c.b16 %v1632, %v1631
        %v1642 = vpack.c.b16 %v1634, %v1633
        %v1659 = vunpack.c.l.b16 %v1355
        %v1660 = vunpack.c.l.b16 %v1356
        %v1661 = vunpack.c.l.b16 %v1357
        %v1662 = vunpack.c.l.b16 %v1358
        %v1663 = vunpack.c.l.b16 %v1359
        %v1664 = vunpack.c.l.b16 %v1360
        %v1665 = vunpack.c.l.b16 %v1361
        %v1666 = vunpack.c.l.b16 %v1362
        %v1667 = vunpack.c.l.b16 %v1363
        %v1668 = vunpack.c.l.b16 %v1364
        %v1669 = vunpack.c.l.b16 %v1365
        %v1670 = vunpack.c.l.b16 %v1366
        %v1671 = vunpack.c.l.b16 %v1367
        %v1672 = vunpack.c.l.b16 %v1368
        %v1673 = vunpack.c.l.b16 %v1369
        %v1674 = vunpack.c.l.b16 %v1370
        %v1675 = vpack.c.b16 %v1660, %v1659
        %v1676 = vpack.c.b16 %v1662, %v1661
        %v1677 = vpack.c.b16 %v1664, %v1663
        %v1678 = vpack.c.b16 %v1666, %v1665
        %v1679 = vpack.c.b16 %v1668, %v1667
        %v1680 = vpack.c.b16 %v1670, %v1669
        %v1681 = vpack.c.b16 %v1672, %v1671
        %v1682 = vpack.c.b16 %v1674, %v1673
        %v1699 = vunpack.c.l.b16 %v1475
        %v1700 = vunpack.c.l.b16 %v1476
        %v1701 = vunpack.c.l.b16 %v1477
        %v1702 = vunpack.c.l.b16 %v1478
        %v1703 = vunpack.c.l.b16 %v1479
        %v1704 = vunpack.c.l.b16 %v1480
        %v1705 = vunpack.c.l.b16 %v1481
        %v1706 = vunpack.c.l.b16 %v1482
        %v1707 = vunpack.c.l.b16 %v1483
        %v1708 = vunpack.c.l.b16 %v1484
        %v1709 = vunpack.c.l.b16 %v1485
        %v1710 = vunpack.c.l.b16 %v1486
        %v1711 = vunpack.c.l.b16 %v1487
        %v1712 = vunpack.c.l.b16 %v1488
        %v1713 = vunpack.c.l.b16 %v1489
        %v1714 = vunpack.c.l.b16 %v1490
        %v1715 = vpack.c.b16 %v1700, %v1699
        %v1716 = vpack.c.b16 %v1702, %v1701
        %v1717 = vpack.c.b16 %v1704, %v1703
        %v1718 = vpack.c.b16 %v1706, %v1705
        %v1719 = vpack.c.b16 %v1708, %v1707
        %v1720 = vpack.c.b16 %v1710, %v1709
        %v1721 = vpack.c.b16 %v1712, %v1711
        %v1722 = vpack.c.b16 %v1714, %v1713
        %v1739 = vunpack.c.l.b16 %v1587
        %v1740 = vunpack.c.l.b16 %v1588
        %v1741 = vunpack.c.l.b16 %v1589
        %v1742 = vunpack.c.l.b16 %v1590
        %v1743 = vunpack.c.l.b16 %v1591
        %v1744 = vunpack.c.l.b16 %v1592
        %v1745 = vunpack.c.l.b16 %v1593
        %v1746 = vunpack.c.l.b16 %v1594
        %v1747 = vunpack.c.l.b16 %v1595
        %v1748 = vunpack.c.l.b16 %v1596
        %v1749 = vunpack.c.l.b16 %v1597
        %v1750 = vunpack.c.l.b16 %v1598
        %v1751 = vunpack.c.l.b16 %v1599
        %v1752 = vunpack.c.l.b16 %v1600
        %v1753 = vunpack.c.l.b16 %v1601
        %v1754 = vunpack.c.l.b16 %v1602
        %v1755 = vpack.c.b16 %v1740, %v1739
        %v1756 = vpack.c.b16 %v1742, %v1741
        %v1757 = vpack.c.b16 %v1744, %v1743
        %v1758 = vpack.c.b16 %v1746, %v1745
        %v1759 = vpack.c.b16 %v1748, %v1747
        %v1760 = vpack.c.b16 %v1750, %v1749
        %v1761 = vpack.c.b16 %v1752, %v1751
        %v1762 = vpack.c.b16 %v1754, %v1753
        %v1764 = vperm.slane %v401, 0
        %v1767 = vsel %vm957, %v1635, 0
        %v1770 = vsel %vm957, %v1636, 0
        %v1773 = vsel %vm957, %v1637, 0
        %v1776 = vsel %vm957, %v1638, 0
        %v1779 = vsel %vm957, %v1639, 0
        %v1782 = vsel %vm957, %v1640, 0
        %v1785 = vsel %vm957, %v1641, 0
        %v1788 = vsel %vm957, %v1642, 0
        %v1791 = vsel %vm957, %v1675, 0
        %v1794 = vsel %vm957, %v1676, 0
        %v1797 = vsel %vm957, %v1677, 0
        %v1800 = vsel %vm957, %v1678, 0
        %v1803 = vsel %vm957, %v1679, 0
        %v1806 = vsel %vm957, %v1680, 0
        %v1809 = vsel %vm957, %v1681, 0
        %v1812 = vsel %vm957, %v1682, 0
        %v1815 = vsel %vm957, %v1715, 0
        %v1818 = vsel %vm957, %v1716, 0
        %v1821 = vsel %vm957, %v1717, 0
        %v1824 = vsel %vm957, %v1718, 0
        %v1827 = vsel %vm957, %v1719, 0
        %v1830 = vsel %vm957, %v1720, 0
        %v1833 = vsel %vm957, %v1721, 0
        %v1836 = vsel %vm957, %v1722, 0
        %v1839 = vsel %vm957, %v1755, 0
        %v1842 = vsel %vm957, %v1756, 0
        %v1845 = vsel %vm957, %v1757, 0
        %v1848 = vsel %vm957, %v1758, 0
        %v1851 = vsel %vm957, %v1759, 0
        %v1854 = vsel %vm957, %v1760, 0
        %v1857 = vsel %vm957, %v1761, 0
        %v1860 = vsel %vm957, %v1762, 0
        %vm1862 = vcmask 1043456
        %v1864 = vsel %vm1862, %v382, 0
        %1866 = vmatpush.bf16.msra.mxu0 0
        %1867 = vmatpush.bf16.msra.mxu0 0
        %1868 = vmatpush.bf16.msra.mxu0 0
        %1869 = vmatpush.bf16.msra.mxu0 0
        %1870 = vmatpush.bf16.msra.mxu0 0
        %1871 = vmatpush.bf16.msra.mxu0 0
        %1872 = vmatpush.bf16.msra.mxu0 0
        %1873 = vmatpush.bf16.msra.mxu0 %v1864
        %1874 = vmatmul.bf16.gmra.mxu0 %v1767
        %v1875 = vpop.f32.mrf.mxu0
        %v1876 = vadd.f32 %v1764, %v1875
        %v1877 = vpop.f32.mrf.mxu0
        %v1878 = vadd.f32 %v1764, %v1877
        %1879 = vmatmul.bf16.gmra.mxu0 %v1770
        %v1880 = vpop.f32.mrf.mxu0
        %v1881 = vadd.f32 %v1764, %v1880
        %v1882 = vpop.f32.mrf.mxu0
        %v1883 = vadd.f32 %v1764, %v1882
        %1884 = vmatmul.bf16.gmra.mxu0 %v1773
        %v1885 = vpop.f32.mrf.mxu0
        %v1886 = vadd.f32 %v1764, %v1885
        %v1887 = vpop.f32.mrf.mxu0
        %v1888 = vadd.f32 %v1764, %v1887
        %1889 = vmatmul.bf16.gmra.mxu0 %v1776
        %v1890 = vpop.f32.mrf.mxu0
        %v1891 = vadd.f32 %v1764, %v1890
        %v1892 = vpop.f32.mrf.mxu0
        %v1893 = vadd.f32 %v1764, %v1892
        %1894 = vmatmul.bf16.gmra.mxu0 %v1779
        %v1895 = vpop.f32.mrf.mxu0
        %v1896 = vadd.f32 %v1764, %v1895
        %v1897 = vpop.f32.mrf.mxu0
        %v1898 = vadd.f32 %v1764, %v1897
        %1899 = vmatmul.bf16.gmra.mxu0 %v1782
        %v1900 = vpop.f32.mrf.mxu0
        %v1901 = vadd.f32 %v1764, %v1900
        %v1902 = vpop.f32.mrf.mxu0
        %v1903 = vadd.f32 %v1764, %v1902
        %1904 = vmatmul.bf16.gmra.mxu0 %v1785
        %v1905 = vpop.f32.mrf.mxu0
        %v1906 = vadd.f32 %v1764, %v1905
        %v1907 = vpop.f32.mrf.mxu0
        %v1908 = vadd.f32 %v1764, %v1907
        %1909 = vmatmul.bf16.gmra.mxu0 %v1788
        %v1910 = vpop.f32.mrf.mxu0
        %v1911 = vadd.f32 %v1764, %v1910
        %v1912 = vpop.f32.mrf.mxu0
        %v1913 = vadd.f32 %v1764, %v1912
        %1914 = vmatmul.bf16.gmra.mxu0 %v1791
        %v1915 = vpop.f32.mrf.mxu0
        %v1916 = vadd.f32 %v1764, %v1915
        %v1917 = vpop.f32.mrf.mxu0
        %v1918 = vadd.f32 %v1764, %v1917
        %1919 = vmatmul.bf16.gmra.mxu0 %v1794
        %v1920 = vpop.f32.mrf.mxu0
        %v1921 = vadd.f32 %v1764, %v1920
        %v1922 = vpop.f32.mrf.mxu0
        %v1923 = vadd.f32 %v1764, %v1922
        %1924 = vmatmul.bf16.gmra.mxu0 %v1797
        %v1925 = vpop.f32.mrf.mxu0
        %v1926 = vadd.f32 %v1764, %v1925
        %v1927 = vpop.f32.mrf.mxu0
        %v1928 = vadd.f32 %v1764, %v1927
        %1929 = vmatmul.bf16.gmra.mxu0 %v1800
        %v1930 = vpop.f32.mrf.mxu0
        %v1931 = vadd.f32 %v1764, %v1930
        %v1932 = vpop.f32.mrf.mxu0
        %v1933 = vadd.f32 %v1764, %v1932
        %1934 = vmatmul.bf16.gmra.mxu0 %v1803
        %v1935 = vpop.f32.mrf.mxu0
        %v1936 = vadd.f32 %v1764, %v1935
        %v1937 = vpop.f32.mrf.mxu0
        %v1938 = vadd.f32 %v1764, %v1937
        %1939 = vmatmul.bf16.gmra.mxu0 %v1806
        %v1940 = vpop.f32.mrf.mxu0
        %v1941 = vadd.f32 %v1764, %v1940
        %v1942 = vpop.f32.mrf.mxu0
        %v1943 = vadd.f32 %v1764, %v1942
        %1944 = vmatmul.bf16.gmra.mxu0 %v1809
        %v1945 = vpop.f32.mrf.mxu0
        %v1946 = vadd.f32 %v1764, %v1945
        %v1947 = vpop.f32.mrf.mxu0
        %v1948 = vadd.f32 %v1764, %v1947
        %1949 = vmatmul.bf16.gmra.mxu0 %v1812
        %v1950 = vpop.f32.mrf.mxu0
        %v1951 = vadd.f32 %v1764, %v1950
        %v1952 = vpop.f32.mrf.mxu0
        %v1953 = vadd.f32 %v1764, %v1952
        %1954 = vmatmul.bf16.gmra.mxu0 %v1815
        %v1955 = vpop.f32.mrf.mxu0
        %v1956 = vadd.f32 %v1764, %v1955
        %v1957 = vpop.f32.mrf.mxu0
        %v1958 = vadd.f32 %v1764, %v1957
        %1959 = vmatmul.bf16.gmra.mxu0 %v1818
        %v1960 = vpop.f32.mrf.mxu0
        %v1961 = vadd.f32 %v1764, %v1960
        %v1962 = vpop.f32.mrf.mxu0
        %v1963 = vadd.f32 %v1764, %v1962
        %1964 = vmatmul.bf16.gmra.mxu0 %v1821
        %v1965 = vpop.f32.mrf.mxu0
        %v1966 = vadd.f32 %v1764, %v1965
        %v1967 = vpop.f32.mrf.mxu0
        %v1968 = vadd.f32 %v1764, %v1967
        %1969 = vmatmul.bf16.gmra.mxu0 %v1824
        %v1970 = vpop.f32.mrf.mxu0
        %v1971 = vadd.f32 %v1764, %v1970
        %v1972 = vpop.f32.mrf.mxu0
        %v1973 = vadd.f32 %v1764, %v1972
        %1974 = vmatmul.bf16.gmra.mxu0 %v1827
        %v1975 = vpop.f32.mrf.mxu0
        %v1976 = vadd.f32 %v1764, %v1975
        %v1977 = vpop.f32.mrf.mxu0
        %v1978 = vadd.f32 %v1764, %v1977
        %1979 = vmatmul.bf16.gmra.mxu0 %v1830
        %v1980 = vpop.f32.mrf.mxu0
        %v1981 = vadd.f32 %v1764, %v1980
        %v1982 = vpop.f32.mrf.mxu0
        %v1983 = vadd.f32 %v1764, %v1982
        %1984 = vmatmul.bf16.gmra.mxu0 %v1833
        %v1985 = vpop.f32.mrf.mxu0
        %v1986 = vadd.f32 %v1764, %v1985
        %v1987 = vpop.f32.mrf.mxu0
        %v1988 = vadd.f32 %v1764, %v1987
        %1989 = vmatmul.bf16.gmra.mxu0 %v1836
        %v1990 = vpop.f32.mrf.mxu0
        %v1991 = vadd.f32 %v1764, %v1990
        %v1992 = vpop.f32.mrf.mxu0
        %v1993 = vadd.f32 %v1764, %v1992
        %1994 = vmatmul.bf16.gmra.mxu0 %v1839
        %v1995 = vpop.f32.mrf.mxu0
        %v1996 = vadd.f32 %v1764, %v1995
        %v1997 = vpop.f32.mrf.mxu0
        %v1998 = vadd.f32 %v1764, %v1997
        %1999 = vmatmul.bf16.gmra.mxu0 %v1842
        %v2000 = vpop.f32.mrf.mxu0
        %v2001 = vadd.f32 %v1764, %v2000
        %v2002 = vpop.f32.mrf.mxu0
        %v2003 = vadd.f32 %v1764, %v2002
        %2004 = vmatmul.bf16.gmra.mxu0 %v1845
        %v2005 = vpop.f32.mrf.mxu0
        %v2006 = vadd.f32 %v1764, %v2005
        %v2007 = vpop.f32.mrf.mxu0
        %v2008 = vadd.f32 %v1764, %v2007
        %2009 = vmatmul.bf16.gmra.mxu0 %v1848
        %v2010 = vpop.f32.mrf.mxu0
        %v2011 = vadd.f32 %v1764, %v2010
        %v2012 = vpop.f32.mrf.mxu0
        %v2013 = vadd.f32 %v1764, %v2012
        %2014 = vmatmul.bf16.gmra.mxu0 %v1851
        %v2015 = vpop.f32.mrf.mxu0
        %v2016 = vadd.f32 %v1764, %v2015
        %v2017 = vpop.f32.mrf.mxu0
        %v2018 = vadd.f32 %v1764, %v2017
        %2019 = vmatmul.bf16.gmra.mxu0 %v1854
        %v2020 = vpop.f32.mrf.mxu0
        %v2021 = vadd.f32 %v1764, %v2020
        %v2022 = vpop.f32.mrf.mxu0
        %v2023 = vadd.f32 %v1764, %v2022
        %2024 = vmatmul.bf16.gmra.mxu0 %v1857
        %v2025 = vpop.f32.mrf.mxu0
        %v2026 = vadd.f32 %v1764, %v2025
        %v2027 = vpop.f32.mrf.mxu0
        %v2028 = vadd.f32 %v1764, %v2027
        %2029 = vmatmul.bf16.gmra.mxu0 %v1860
        %v2030 = vpop.f32.mrf.mxu0
        %v2031 = vadd.f32 %v1764, %v2030
        %v2032 = vpop.f32.mrf.mxu0
        %v2033 = vadd.f32 %v1764, %v2032
        %2034 = vdwg.mxu0
        %v2035 = vmax.f32 %v1876, 0.0
        %v2036 = vmax.f32 %v1878, 0.0
        %v2037 = vmax.f32 %v1881, 0.0
        %v2038 = vmax.f32 %v1883, 0.0
        %v2039 = vmax.f32 %v1886, 0.0
        %v2040 = vmax.f32 %v1888, 0.0
        %v2041 = vmax.f32 %v1891, 0.0
        %v2042 = vmax.f32 %v1893, 0.0
        %v2043 = vmax.f32 %v1896, 0.0
        %v2044 = vmax.f32 %v1898, 0.0
        %v2045 = vmax.f32 %v1901, 0.0
        %v2046 = vmax.f32 %v1903, 0.0
        %v2047 = vmax.f32 %v1906, 0.0
        %v2048 = vmax.f32 %v1908, 0.0
        %v2049 = vmax.f32 %v1911, 0.0
        %v2050 = vmax.f32 %v1913, 0.0
        %v2051 = vmax.f32 %v1916, 0.0
        %v2052 = vmax.f32 %v1918, 0.0
        %v2053 = vmax.f32 %v1921, 0.0
        %v2054 = vmax.f32 %v1923, 0.0
        %v2055 = vmax.f32 %v1926, 0.0
        %v2056 = vmax.f32 %v1928, 0.0
        %v2057 = vmax.f32 %v1931, 0.0
        %v2058 = vmax.f32 %v1933, 0.0
        %v2059 = vmax.f32 %v1936, 0.0
        %v2060 = vmax.f32 %v1938, 0.0
        %v2061 = vmax.f32 %v1941, 0.0
        %v2062 = vmax.f32 %v1943, 0.0
        %v2063 = vmax.f32 %v1946, 0.0
        %v2064 = vmax.f32 %v1948, 0.0
        %v2065 = vmax.f32 %v1951, 0.0
        %v2066 = vmax.f32 %v1953, 0.0
        %v2067 = vmax.f32 %v1956, 0.0
        %v2068 = vmax.f32 %v1958, 0.0
        %v2069 = vmax.f32 %v1961, 0.0
        %v2070 = vmax.f32 %v1963, 0.0
        %v2071 = vmax.f32 %v1966, 0.0
        %v2072 = vmax.f32 %v1968, 0.0
        %v2073 = vmax.f32 %v1971, 0.0
        %v2074 = vmax.f32 %v1973, 0.0
        %v2075 = vmax.f32 %v1976, 0.0
        %v2076 = vmax.f32 %v1978, 0.0
        %v2077 = vmax.f32 %v1981, 0.0
        %v2078 = vmax.f32 %v1983, 0.0
        %v2079 = vmax.f32 %v1986, 0.0
        %v2080 = vmax.f32 %v1988, 0.0
        %v2081 = vmax.f32 %v1991, 0.0
        %v2082 = vmax.f32 %v1993, 0.0
        %v2083 = vmax.f32 %v1996, 0.0
        %v2084 = vmax.f32 %v1998, 0.0
        %v2085 = vmax.f32 %v2001, 0.0
        %v2086 = vmax.f32 %v2003, 0.0
        %v2087 = vmax.f32 %v2006, 0.0
        %v2088 = vmax.f32 %v2008, 0.0
        %v2089 = vmax.f32 %v2011, 0.0
        %v2090 = vmax.f32 %v2013, 0.0
        %v2091 = vmax.f32 %v2016, 0.0
        %v2092 = vmax.f32 %v2018, 0.0
        %v2093 = vmax.f32 %v2021, 0.0
        %v2094 = vmax.f32 %v2023, 0.0
        %v2095 = vmax.f32 %v2026, 0.0
        %v2096 = vmax.f32 %v2028, 0.0
        %v2097 = vmax.f32 %v2031, 0.0
        %v2098 = vmax.f32 %v2033, 0.0
        %2099 = vst.msk [vmem:[%s365] sm:$0xff] %vm974, %v2035
        %2100 = vst.msk [vmem:[%s365 + $0x8] sm:$0xff] %vm974, %v2036
        %2101 = vst.msk [vmem:[%s365 + $0x10] sm:$0xff] %vm974, %v2037
        %2102 = vst.msk [vmem:[%s365 + $0x18] sm:$0xff] %vm974, %v2038
        %2103 = vst.msk [vmem:[%s365 + $0x20] sm:$0xff] %vm974, %v2039
        %2104 = vst.msk [vmem:[%s365 + $0x28] sm:$0xff] %vm974, %v2040
        %2105 = vst.msk [vmem:[%s365 + $0x30] sm:$0xff] %vm974, %v2041
        %2106 = vst.msk [vmem:[%s365 + $0x38] sm:$0xff] %vm974, %v2042
        %2107 = vst.msk [vmem:[%s365 + $0x40] sm:$0xff] %vm974, %v2043
        %2108 = vst.msk [vmem:[%s365 + $0x48] sm:$0xff] %vm974, %v2044
        %2109 = vst.msk [vmem:[%s365 + $0x50] sm:$0xff] %vm974, %v2045
        %2110 = vst.msk [vmem:[%s365 + $0x58] sm:$0xff] %vm974, %v2046
        %2111 = vst.msk [vmem:[%s365 + $0x60] sm:$0xff] %vm974, %v2047
        %2112 = vst.msk [vmem:[%s365 + $0x68] sm:$0xff] %vm974, %v2048
        %2113 = vst.msk [vmem:[%s365 + $0x70] sm:$0xff] %vm974, %v2049
        %2114 = vst.msk [vmem:[%s365 + $0x78] sm:$0xff] %vm974, %v2050
        %2115 = vst.msk [vmem:[%s365 + $0x80] sm:$0xff] %vm974, %v2051
        %2116 = vst.msk [vmem:[%s365 + $0x88] sm:$0xff] %vm974, %v2052
        %2117 = vst.msk [vmem:[%s365 + $0x90] sm:$0xff] %vm974, %v2053
        %2118 = vst.msk [vmem:[%s365 + $0x98] sm:$0xff] %vm974, %v2054
        %2119 = vst.msk [vmem:[%s365 + $0xa0] sm:$0xff] %vm974, %v2055
        %2120 = vst.msk [vmem:[%s365 + $0xa8] sm:$0xff] %vm974, %v2056
        %2121 = vst.msk [vmem:[%s365 + $0xb0] sm:$0xff] %vm974, %v2057
        %2122 = vst.msk [vmem:[%s365 + $0xb8] sm:$0xff] %vm974, %v2058
        %2123 = vst.msk [vmem:[%s365 + $0xc0] sm:$0xff] %vm974, %v2059
        %2124 = vst.msk [vmem:[%s365 + $0xc8] sm:$0xff] %vm974, %v2060
        %2125 = vst.msk [vmem:[%s365 + $0xd0] sm:$0xff] %vm974, %v2061
        %2126 = vst.msk [vmem:[%s365 + $0xd8] sm:$0xff] %vm974, %v2062
        %2127 = vst.msk [vmem:[%s365 + $0xe0] sm:$0xff] %vm974, %v2063
        %2128 = vst.msk [vmem:[%s365 + $0xe8] sm:$0xff] %vm974, %v2064
        %2129 = vst.msk [vmem:[%s365 + $0xf0] sm:$0xff] %vm974, %v2065
        %2130 = vst.msk [vmem:[%s365 + $0xf8] sm:$0xff] %vm974, %v2066
        %2131 = vst.msk [vmem:[%s365 + $0x100] sm:$0xff] %vm974, %v2067
        %2132 = vst.msk [vmem:[%s365 + $0x108] sm:$0xff] %vm974, %v2068
        %2133 = vst.msk [vmem:[%s365 + $0x110] sm:$0xff] %vm974, %v2069
        %2134 = vst.msk [vmem:[%s365 + $0x118] sm:$0xff] %vm974, %v2070
        %2135 = vst.msk [vmem:[%s365 + $0x120] sm:$0xff] %vm974, %v2071
        %2136 = vst.msk [vmem:[%s365 + $0x128] sm:$0xff] %vm974, %v2072
        %2137 = vst.msk [vmem:[%s365 + $0x130] sm:$0xff] %vm974, %v2073
        %2138 = vst.msk [vmem:[%s365 + $0x138] sm:$0xff] %vm974, %v2074
        %2139 = vst.msk [vmem:[%s365 + $0x140] sm:$0xff] %vm974, %v2075
        %2140 = vst.msk [vmem:[%s365 + $0x148] sm:$0xff] %vm974, %v2076
        %2141 = vst.msk [vmem:[%s365 + $0x150] sm:$0xff] %vm974, %v2077
        %2142 = vst.msk [vmem:[%s365 + $0x158] sm:$0xff] %vm974, %v2078
        %2143 = vst.msk [vmem:[%s365 + $0x160] sm:$0xff] %vm974, %v2079
        %2144 = vst.msk [vmem:[%s365 + $0x168] sm:$0xff] %vm974, %v2080
        %2145 = vst.msk [vmem:[%s365 + $0x170] sm:$0xff] %vm974, %v2081
        %2146 = vst.msk [vmem:[%s365 + $0x178] sm:$0xff] %vm974, %v2082
        %2147 = vst.msk [vmem:[%s365 + $0x180] sm:$0xff] %vm974, %v2083
        %2148 = vst.msk [vmem:[%s365 + $0x188] sm:$0xff] %vm974, %v2084
        %2149 = vst.msk [vmem:[%s365 + $0x190] sm:$0xff] %vm974, %v2085
        %2150 = vst.msk [vmem:[%s365 + $0x198] sm:$0xff] %vm974, %v2086
        %2151 = vst.msk [vmem:[%s365 + $0x1a0] sm:$0xff] %vm974, %v2087
        %2152 = vst.msk [vmem:[%s365 + $0x1a8] sm:$0xff] %vm974, %v2088
        %2153 = vst.msk [vmem:[%s365 + $0x1b0] sm:$0xff] %vm974, %v2089
        %2154 = vst.msk [vmem:[%s365 + $0x1b8] sm:$0xff] %vm974, %v2090
        %2155 = vst.msk [vmem:[%s365 + $0x1c0] sm:$0xff] %vm974, %v2091
        %2156 = vst.msk [vmem:[%s365 + $0x1c8] sm:$0xff] %vm974, %v2092
        %2157 = vst.msk [vmem:[%s365 + $0x1d0] sm:$0xff] %vm974, %v2093
        %2158 = vst.msk [vmem:[%s365 + $0x1d8] sm:$0xff] %vm974, %v2094
        %2159 = vst.msk [vmem:[%s365 + $0x1e0] sm:$0xff] %vm974, %v2095
        %2160 = vst.msk [vmem:[%s365 + $0x1e8] sm:$0xff] %vm974, %v2096
        %2161 = vst.msk [vmem:[%s365 + $0x1f0] sm:$0xff] %vm974, %v2097
        %2162 = vst.msk [vmem:[%s365 + $0x1f8] sm:$0xff] %vm974, %v2098
        %s2163 = sand.u32 %s226, 1
        %s2164 = sand.u32 %s226, 1
        %s2165 = smul.addr %s2164, 512
        %s2166 = scalar_lea.vmem [#allocation4], %s2165
        // Predicated region
        $region57: #{tpu_custom_call.1} parent=51 // pred_check
          %p2167 = pneg %p236
        $region58: #{tpu_custom_call.1} parent=51 // pred_check_branch
          %2169 = sbr.rel (%p2167) target = $region60
        $region59: #{tpu_custom_call.1} parent=51 // pred_region
          %s2170 = smul.u32 16, %s27
          %s2171 = smul.addr %s26, 128
          %s2172 = sadd.s32 %s2170, %s2171
          %s2173 = smul.addr %s2172, 8
          %s2174 = scalar_lea.vmem %s8, %s2173
          // Predicated region
          $region61: #{tpu_custom_call.1} parent=59 // pred_check
            _
          $region62: #{tpu_custom_call.1} parent=59 // pred_check_branch
            %2176 = sbr.rel (0) target = $region64
          $region63: #{tpu_custom_call.1} parent=59 // pred_region
            // Predicated region
            $region65: #{tpu_custom_call.1} parent=63 // pred_check
              _
            $region66: #{tpu_custom_call.1} parent=63 // pred_check_branch
              %2178 = sbr.rel (0) target = $region68
            $region67: #{tpu_custom_call.1} parent=63 // pred_region
              // Predicated region
              $region80: #{tpu_custom_call.1} parent=67 // pred_check
                _
              $region81: #{tpu_custom_call.1} parent=67 // pred_check_branch
                %2320 = sbr.rel (0) target = $region83
              $region82: #{tpu_custom_call.1} parent=67 // pred_region
                loop: start=0, step=1, limit=1
                $region84: #{tpu_custom_call.1} parent=82 // loop_pre_header
                  _
                $region85: #{tpu_custom_call.1} parent=82 // loop_header
                  %s2322 = sphi 0, %s2326
                  %p2323 = scmp.ge.s32.totalorder %s2322, 1
                  %s2327 = sphi %s2166, %s2166
                  %s2328 = sphi %s2174, %s2174
                $region86: #{tpu_custom_call.1} parent=82 // loop_header_branch
                  %2325 = sbr.rel (%p2323) target = $region90
                $region87: #{tpu_custom_call.1} parent=82 // loop_body
                  %v2329 = vld [vmem:[%s2327] sm:$0xff]
                  %2330 = vst [vmem:[%s2328] sm:$0xff] %v2329
                  %v2331 = vld [vmem:[%s2327 + $0x8] sm:$0xff]
                  %2332 = vst [vmem:[%s2328 + $0x8] sm:$0xff] %v2331
                  %v2333 = vld [vmem:[%s2327 + $0x10] sm:$0xff]
                  %2334 = vst [vmem:[%s2328 + $0x10] sm:$0xff] %v2333
                  %v2335 = vld [vmem:[%s2327 + $0x18] sm:$0xff]
                  %2336 = vst [vmem:[%s2328 + $0x18] sm:$0xff] %v2335
                  %v2337 = vld [vmem:[%s2327 + $0x20] sm:$0xff]
                  %2338 = vst [vmem:[%s2328 + $0x20] sm:$0xff] %v2337
                  %v2339 = vld [vmem:[%s2327 + $0x28] sm:$0xff]
                  %2340 = vst [vmem:[%s2328 + $0x28] sm:$0xff] %v2339
                  %v2341 = vld [vmem:[%s2327 + $0x30] sm:$0xff]
                  %2342 = vst [vmem:[%s2328 + $0x30] sm:$0xff] %v2341
                  %v2343 = vld [vmem:[%s2327 + $0x38] sm:$0xff]
                  %2344 = vst [vmem:[%s2328 + $0x38] sm:$0xff] %v2343
                  %v2345 = vld [vmem:[%s2327 + $0x40] sm:$0xff]
                  %2346 = vst [vmem:[%s2328 + $0x40] sm:$0xff] %v2345
                  %v2347 = vld [vmem:[%s2327 + $0x48] sm:$0xff]
                  %2348 = vst [vmem:[%s2328 + $0x48] sm:$0xff] %v2347
                  %v2349 = vld [vmem:[%s2327 + $0x50] sm:$0xff]
                  %2350 = vst [vmem:[%s2328 + $0x50] sm:$0xff] %v2349
                  %v2351 = vld [vmem:[%s2327 + $0x58] sm:$0xff]
                  %2352 = vst [vmem:[%s2328 + $0x58] sm:$0xff] %v2351
                  %v2353 = vld [vmem:[%s2327 + $0x60] sm:$0xff]
                  %2354 = vst [vmem:[%s2328 + $0x60] sm:$0xff] %v2353
                  %v2355 = vld [vmem:[%s2327 + $0x68] sm:$0xff]
                  %2356 = vst [vmem:[%s2328 + $0x68] sm:$0xff] %v2355
                  %v2357 = vld [vmem:[%s2327 + $0x70] sm:$0xff]
                  %2358 = vst [vmem:[%s2328 + $0x70] sm:$0xff] %v2357
                  %v2359 = vld [vmem:[%s2327 + $0x78] sm:$0xff]
                  %2360 = vst [vmem:[%s2328 + $0x78] sm:$0xff] %v2359
                  %v2361 = vld [vmem:[%s2327 + $0x80] sm:$0xff]
                  %2362 = vst [vmem:[%s2328 + $0x100] sm:$0xff] %v2361
                  %v2363 = vld [vmem:[%s2327 + $0x88] sm:$0xff]
                  %2364 = vst [vmem:[%s2328 + $0x108] sm:$0xff] %v2363
                  %v2365 = vld [vmem:[%s2327 + $0x90] sm:$0xff]
                  %2366 = vst [vmem:[%s2328 + $0x110] sm:$0xff] %v2365
                  %v2367 = vld [vmem:[%s2327 + $0x98] sm:$0xff]
                  %2368 = vst [vmem:[%s2328 + $0x118] sm:$0xff] %v2367
                  %v2369 = vld [vmem:[%s2327 + $0xa0] sm:$0xff]
                  %2370 = vst [vmem:[%s2328 + $0x120] sm:$0xff] %v2369
                  %v2371 = vld [vmem:[%s2327 + $0xa8] sm:$0xff]
                  %2372 = vst [vmem:[%s2328 + $0x128] sm:$0xff] %v2371
                  %v2373 = vld [vmem:[%s2327 + $0xb0] sm:$0xff]
                  %2374 = vst [vmem:[%s2328 + $0x130] sm:$0xff] %v2373
                  %v2375 = vld [vmem:[%s2327 + $0xb8] sm:$0xff]
                  %2376 = vst [vmem:[%s2328 + $0x138] sm:$0xff] %v2375
                  %v2377 = vld [vmem:[%s2327 + $0xc0] sm:$0xff]
                  %2378 = vst [vmem:[%s2328 + $0x140] sm:$0xff] %v2377
                  %v2379 = vld [vmem:[%s2327 + $0xc8] sm:$0xff]
                  %2380 = vst [vmem:[%s2328 + $0x148] sm:$0xff] %v2379
                  %v2381 = vld [vmem:[%s2327 + $0xd0] sm:$0xff]
                  %2382 = vst [vmem:[%s2328 + $0x150] sm:$0xff] %v2381
                  %v2383 = vld [vmem:[%s2327 + $0xd8] sm:$0xff]
                  %2384 = vst [vmem:[%s2328 + $0x158] sm:$0xff] %v2383
                  %v2385 = vld [vmem:[%s2327 + $0xe0] sm:$0xff]
                  %2386 = vst [vmem:[%s2328 + $0x160] sm:$0xff] %v2385
                  %v2387 = vld [vmem:[%s2327 + $0xe8] sm:$0xff]
                  %2388 = vst [vmem:[%s2328 + $0x168] sm:$0xff] %v2387
                  %v2389 = vld [vmem:[%s2327 + $0xf0] sm:$0xff]
                  %2390 = vst [vmem:[%s2328 + $0x170] sm:$0xff] %v2389
                  %v2391 = vld [vmem:[%s2327 + $0xf8] sm:$0xff]
                  %2392 = vst [vmem:[%s2328 + $0x178] sm:$0xff] %v2391
                  %v2393 = vld [vmem:[%s2327 + $0x100] sm:$0xff]
                  %2394 = vst [vmem:[%s2328 + $0x200] sm:$0xff] %v2393
                  %v2395 = vld [vmem:[%s2327 + $0x108] sm:$0xff]
                  %2396 = vst [vmem:[%s2328 + $0x208] sm:$0xff] %v2395
                  %v2397 = vld [vmem:[%s2327 + $0x110] sm:$0xff]
                  %2398 = vst [vmem:[%s2328 + $0x210] sm:$0xff] %v2397
                  %v2399 = vld [vmem:[%s2327 + $0x118] sm:$0xff]
                  %2400 = vst [vmem:[%s2328 + $0x218] sm:$0xff] %v2399
                  %v2401 = vld [vmem:[%s2327 + $0x120] sm:$0xff]
                  %2402 = vst [vmem:[%s2328 + $0x220] sm:$0xff] %v2401
                  %v2403 = vld [vmem:[%s2327 + $0x128] sm:$0xff]
                  %2404 = vst [vmem:[%s2328 + $0x228] sm:$0xff] %v2403
                  %v2405 = vld [vmem:[%s2327 + $0x130] sm:$0xff]
                  %2406 = vst [vmem:[%s2328 + $0x230] sm:$0xff] %v2405
                  %v2407 = vld [vmem:[%s2327 + $0x138] sm:$0xff]
                  %2408 = vst [vmem:[%s2328 + $0x238] sm:$0xff] %v2407
                  %v2409 = vld [vmem:[%s2327 + $0x140] sm:$0xff]
                  %2410 = vst [vmem:[%s2328 + $0x240] sm:$0xff] %v2409
                  %v2411 = vld [vmem:[%s2327 + $0x148] sm:$0xff]
                  %2412 = vst [vmem:[%s2328 + $0x248] sm:$0xff] %v2411
                  %v2413 = vld [vmem:[%s2327 + $0x150] sm:$0xff]
                  %2414 = vst [vmem:[%s2328 + $0x250] sm:$0xff] %v2413
                  %v2415 = vld [vmem:[%s2327 + $0x158] sm:$0xff]
                  %2416 = vst [vmem:[%s2328 + $0x258] sm:$0xff] %v2415
                  %v2417 = vld [vmem:[%s2327 + $0x160] sm:$0xff]
                  %2418 = vst [vmem:[%s2328 + $0x260] sm:$0xff] %v2417
                  %v2419 = vld [vmem:[%s2327 + $0x168] sm:$0xff]
                  %2420 = vst [vmem:[%s2328 + $0x268] sm:$0xff] %v2419
                  %v2421 = vld [vmem:[%s2327 + $0x170] sm:$0xff]
                  %2422 = vst [vmem:[%s2328 + $0x270] sm:$0xff] %v2421
                  %v2423 = vld [vmem:[%s2327 + $0x178] sm:$0xff]
                  %2424 = vst [vmem:[%s2328 + $0x278] sm:$0xff] %v2423
                  %v2425 = vld [vmem:[%s2327 + $0x180] sm:$0xff]
                  %2426 = vst [vmem:[%s2328 + $0x300] sm:$0xff] %v2425
                  %v2427 = vld [vmem:[%s2327 + $0x188] sm:$0xff]
                  %2428 = vst [vmem:[%s2328 + $0x308] sm:$0xff] %v2427
                  %v2429 = vld [vmem:[%s2327 + $0x190] sm:$0xff]
                  %2430 = vst [vmem:[%s2328 + $0x310] sm:$0xff] %v2429
                  %v2431 = vld [vmem:[%s2327 + $0x198] sm:$0xff]
                  %2432 = vst [vmem:[%s2328 + $0x318] sm:$0xff] %v2431
                  %v2433 = vld [vmem:[%s2327 + $0x1a0] sm:$0xff]
                  %2434 = vst [vmem:[%s2328 + $0x320] sm:$0xff] %v2433
                  %v2435 = vld [vmem:[%s2327 + $0x1a8] sm:$0xff]
                  %2436 = vst [vmem:[%s2328 + $0x328] sm:$0xff] %v2435
                  %v2437 = vld [vmem:[%s2327 + $0x1b0] sm:$0xff]
                  %2438 = vst [vmem:[%s2328 + $0x330] sm:$0xff] %v2437
                  %v2439 = vld [vmem:[%s2327 + $0x1b8] sm:$0xff]
                  %2440 = vst [vmem:[%s2328 + $0x338] sm:$0xff] %v2439
                  %v2441 = vld [vmem:[%s2327 + $0x1c0] sm:$0xff]
                  %2442 = vst [vmem:[%s2328 + $0x340] sm:$0xff] %v2441
                  %v2443 = vld [vmem:[%s2327 + $0x1c8] sm:$0xff]
                  %2444 = vst [vmem:[%s2328 + $0x348] sm:$0xff] %v2443
                  %v2445 = vld [vmem:[%s2327 + $0x1d0] sm:$0xff]
                  %2446 = vst [vmem:[%s2328 + $0x350] sm:$0xff] %v2445
                  %v2447 = vld [vmem:[%s2327 + $0x1d8] sm:$0xff]
                  %2448 = vst [vmem:[%s2328 + $0x358] sm:$0xff] %v2447
                  %v2449 = vld [vmem:[%s2327 + $0x1e0] sm:$0xff]
                  %2450 = vst [vmem:[%s2328 + $0x360] sm:$0xff] %v2449
                  %v2451 = vld [vmem:[%s2327 + $0x1e8] sm:$0xff]
                  %2452 = vst [vmem:[%s2328 + $0x368] sm:$0xff] %v2451
                  %v2453 = vld [vmem:[%s2327 + $0x1f0] sm:$0xff]
                  %2454 = vst [vmem:[%s2328 + $0x370] sm:$0xff] %v2453
                  %v2455 = vld [vmem:[%s2327 + $0x1f8] sm:$0xff]
                  %2456 = vst [vmem:[%s2328 + $0x378] sm:$0xff] %v2455
                $region88: #{tpu_custom_call.1} parent=82 // loop_footer
                  %s2326 = sadd.s32 1, %s2322
                $region89: #{tpu_custom_call.1} parent=82 // loop_footer_branch
                  %2321 = sbr.rel target = $region85
                $region90: #{tpu_custom_call.1} parent=82 // loop_exit
                  _
              $region83: #{tpu_custom_call.1} parent=67 // pred_fallthru
                _
              // Predicated region
              $region91: #{tpu_custom_call.1} parent=67 // pred_check
                _
              $region92: #{tpu_custom_call.1} parent=67 // pred_check_branch
                %2458 = sbr.rel target = $region94
              $region93: #{tpu_custom_call.1} parent=67 // pred_region
                _
              $region94: #{tpu_custom_call.1} parent=67 // pred_fallthru
                _
            $region68: #{tpu_custom_call.1} parent=63 // pred_fallthru
              _
            // Predicated region
            $region69: #{tpu_custom_call.1} parent=63 // pred_check
              _
            $region70: #{tpu_custom_call.1} parent=63 // pred_check_branch
              %2180 = sbr.rel target = $region72
            $region71: #{tpu_custom_call.1} parent=63 // pred_region
              %s2182 = ssub.s32 256, 1
              loop: start=0, step=1, limit=1
              $region73: #{tpu_custom_call.1} parent=71 // loop_pre_header
                _
              $region74: #{tpu_custom_call.1} parent=71 // loop_header
                %s2184 = sphi 0, %s2188
                %p2185 = scmp.ge.s32.totalorder %s2184, 1
                %s2189 = sphi %s2166, %s2166
                %s2190 = sphi %s2174, %s2174
              $region75: #{tpu_custom_call.1} parent=71 // loop_header_branch
                %2187 = sbr.rel (%p2185) target = $region79
              $region76: #{tpu_custom_call.1} parent=71 // loop_body
                %v2191 = vld [vmem:[%s2189] sm:%s2182]
                %2192 = vst [vmem:[%s2190] sm:%s2182] %v2191
                %v2193 = vld [vmem:[%s2189 + $0x8] sm:%s2182]
                %2194 = vst [vmem:[%s2190 + $0x8] sm:%s2182] %v2193
                %v2195 = vld [vmem:[%s2189 + $0x10] sm:%s2182]
                %2196 = vst [vmem:[%s2190 + $0x10] sm:%s2182] %v2195
                %v2197 = vld [vmem:[%s2189 + $0x18] sm:%s2182]
                %2198 = vst [vmem:[%s2190 + $0x18] sm:%s2182] %v2197
                %v2199 = vld [vmem:[%s2189 + $0x20] sm:%s2182]
                %2200 = vst [vmem:[%s2190 + $0x20] sm:%s2182] %v2199
                %v2201 = vld [vmem:[%s2189 + $0x28] sm:%s2182]
                %2202 = vst [vmem:[%s2190 + $0x28] sm:%s2182] %v2201
                %v2203 = vld [vmem:[%s2189 + $0x30] sm:%s2182]
                %2204 = vst [vmem:[%s2190 + $0x30] sm:%s2182] %v2203
                %v2205 = vld [vmem:[%s2189 + $0x38] sm:%s2182]
                %2206 = vst [vmem:[%s2190 + $0x38] sm:%s2182] %v2205
                %v2207 = vld [vmem:[%s2189 + $0x40] sm:%s2182]
                %2208 = vst [vmem:[%s2190 + $0x40] sm:%s2182] %v2207
                %v2209 = vld [vmem:[%s2189 + $0x48] sm:%s2182]
                %2210 = vst [vmem:[%s2190 + $0x48] sm:%s2182] %v2209
                %v2211 = vld [vmem:[%s2189 + $0x50] sm:%s2182]
                %2212 = vst [vmem:[%s2190 + $0x50] sm:%s2182] %v2211
                %v2213 = vld [vmem:[%s2189 + $0x58] sm:%s2182]
                %2214 = vst [vmem:[%s2190 + $0x58] sm:%s2182] %v2213
                %v2215 = vld [vmem:[%s2189 + $0x60] sm:%s2182]
                %2216 = vst [vmem:[%s2190 + $0x60] sm:%s2182] %v2215
                %v2217 = vld [vmem:[%s2189 + $0x68] sm:%s2182]
                %2218 = vst [vmem:[%s2190 + $0x68] sm:%s2182] %v2217
                %v2219 = vld [vmem:[%s2189 + $0x70] sm:%s2182]
                %2220 = vst [vmem:[%s2190 + $0x70] sm:%s2182] %v2219
                %v2221 = vld [vmem:[%s2189 + $0x78] sm:%s2182]
                %2222 = vst [vmem:[%s2190 + $0x78] sm:%s2182] %v2221
                %v2223 = vld [vmem:[%s2189 + $0x80] sm:%s2182]
                %2224 = vst [vmem:[%s2190 + $0x100] sm:%s2182] %v2223
                %v2225 = vld [vmem:[%s2189 + $0x88] sm:%s2182]
                %2226 = vst [vmem:[%s2190 + $0x108] sm:%s2182] %v2225
                %v2227 = vld [vmem:[%s2189 + $0x90] sm:%s2182]
                %2228 = vst [vmem:[%s2190 + $0x110] sm:%s2182] %v2227
                %v2229 = vld [vmem:[%s2189 + $0x98] sm:%s2182]
                %2230 = vst [vmem:[%s2190 + $0x118] sm:%s2182] %v2229
                %v2231 = vld [vmem:[%s2189 + $0xa0] sm:%s2182]
                %2232 = vst [vmem:[%s2190 + $0x120] sm:%s2182] %v2231
                %v2233 = vld [vmem:[%s2189 + $0xa8] sm:%s2182]
                %2234 = vst [vmem:[%s2190 + $0x128] sm:%s2182] %v2233
                %v2235 = vld [vmem:[%s2189 + $0xb0] sm:%s2182]
                %2236 = vst [vmem:[%s2190 + $0x130] sm:%s2182] %v2235
                %v2237 = vld [vmem:[%s2189 + $0xb8] sm:%s2182]
                %2238 = vst [vmem:[%s2190 + $0x138] sm:%s2182] %v2237
                %v2239 = vld [vmem:[%s2189 + $0xc0] sm:%s2182]
                %2240 = vst [vmem:[%s2190 + $0x140] sm:%s2182] %v2239
                %v2241 = vld [vmem:[%s2189 + $0xc8] sm:%s2182]
                %2242 = vst [vmem:[%s2190 + $0x148] sm:%s2182] %v2241
                %v2243 = vld [vmem:[%s2189 + $0xd0] sm:%s2182]
                %2244 = vst [vmem:[%s2190 + $0x150] sm:%s2182] %v2243
                %v2245 = vld [vmem:[%s2189 + $0xd8] sm:%s2182]
                %2246 = vst [vmem:[%s2190 + $0x158] sm:%s2182] %v2245
                %v2247 = vld [vmem:[%s2189 + $0xe0] sm:%s2182]
                %2248 = vst [vmem:[%s2190 + $0x160] sm:%s2182] %v2247
                %v2249 = vld [vmem:[%s2189 + $0xe8] sm:%s2182]
                %2250 = vst [vmem:[%s2190 + $0x168] sm:%s2182] %v2249
                %v2251 = vld [vmem:[%s2189 + $0xf0] sm:%s2182]
                %2252 = vst [vmem:[%s2190 + $0x170] sm:%s2182] %v2251
                %v2253 = vld [vmem:[%s2189 + $0xf8] sm:%s2182]
                %2254 = vst [vmem:[%s2190 + $0x178] sm:%s2182] %v2253
                %v2255 = vld [vmem:[%s2189 + $0x100] sm:%s2182]
                %2256 = vst [vmem:[%s2190 + $0x200] sm:%s2182] %v2255
                %v2257 = vld [vmem:[%s2189 + $0x108] sm:%s2182]
                %2258 = vst [vmem:[%s2190 + $0x208] sm:%s2182] %v2257
                %v2259 = vld [vmem:[%s2189 + $0x110] sm:%s2182]
                %2260 = vst [vmem:[%s2190 + $0x210] sm:%s2182] %v2259
                %v2261 = vld [vmem:[%s2189 + $0x118] sm:%s2182]
                %2262 = vst [vmem:[%s2190 + $0x218] sm:%s2182] %v2261
                %v2263 = vld [vmem:[%s2189 + $0x120] sm:%s2182]
                %2264 = vst [vmem:[%s2190 + $0x220] sm:%s2182] %v2263
                %v2265 = vld [vmem:[%s2189 + $0x128] sm:%s2182]
                %2266 = vst [vmem:[%s2190 + $0x228] sm:%s2182] %v2265
                %v2267 = vld [vmem:[%s2189 + $0x130] sm:%s2182]
                %2268 = vst [vmem:[%s2190 + $0x230] sm:%s2182] %v2267
                %v2269 = vld [vmem:[%s2189 + $0x138] sm:%s2182]
                %2270 = vst [vmem:[%s2190 + $0x238] sm:%s2182] %v2269
                %v2271 = vld [vmem:[%s2189 + $0x140] sm:%s2182]
                %2272 = vst [vmem:[%s2190 + $0x240] sm:%s2182] %v2271
                %v2273 = vld [vmem:[%s2189 + $0x148] sm:%s2182]
                %2274 = vst [vmem:[%s2190 + $0x248] sm:%s2182] %v2273
                %v2275 = vld [vmem:[%s2189 + $0x150] sm:%s2182]
                %2276 = vst [vmem:[%s2190 + $0x250] sm:%s2182] %v2275
                %v2277 = vld [vmem:[%s2189 + $0x158] sm:%s2182]
                %2278 = vst [vmem:[%s2190 + $0x258] sm:%s2182] %v2277
                %v2279 = vld [vmem:[%s2189 + $0x160] sm:%s2182]
                %2280 = vst [vmem:[%s2190 + $0x260] sm:%s2182] %v2279
                %v2281 = vld [vmem:[%s2189 + $0x168] sm:%s2182]
                %2282 = vst [vmem:[%s2190 + $0x268] sm:%s2182] %v2281
                %v2283 = vld [vmem:[%s2189 + $0x170] sm:%s2182]
                %2284 = vst [vmem:[%s2190 + $0x270] sm:%s2182] %v2283
                %v2285 = vld [vmem:[%s2189 + $0x178] sm:%s2182]
                %2286 = vst [vmem:[%s2190 + $0x278] sm:%s2182] %v2285
                %v2287 = vld [vmem:[%s2189 + $0x180] sm:%s2182]
                %2288 = vst [vmem:[%s2190 + $0x300] sm:%s2182] %v2287
                %v2289 = vld [vmem:[%s2189 + $0x188] sm:%s2182]
                %2290 = vst [vmem:[%s2190 + $0x308] sm:%s2182] %v2289
                %v2291 = vld [vmem:[%s2189 + $0x190] sm:%s2182]
                %2292 = vst [vmem:[%s2190 + $0x310] sm:%s2182] %v2291
                %v2293 = vld [vmem:[%s2189 + $0x198] sm:%s2182]
                %2294 = vst [vmem:[%s2190 + $0x318] sm:%s2182] %v2293
                %v2295 = vld [vmem:[%s2189 + $0x1a0] sm:%s2182]
                %2296 = vst [vmem:[%s2190 + $0x320] sm:%s2182] %v2295
                %v2297 = vld [vmem:[%s2189 + $0x1a8] sm:%s2182]
                %2298 = vst [vmem:[%s2190 + $0x328] sm:%s2182] %v2297
                %v2299 = vld [vmem:[%s2189 + $0x1b0] sm:%s2182]
                %2300 = vst [vmem:[%s2190 + $0x330] sm:%s2182] %v2299
                %v2301 = vld [vmem:[%s2189 + $0x1b8] sm:%s2182]
                %2302 = vst [vmem:[%s2190 + $0x338] sm:%s2182] %v2301
                %v2303 = vld [vmem:[%s2189 + $0x1c0] sm:%s2182]
                %2304 = vst [vmem:[%s2190 + $0x340] sm:%s2182] %v2303
                %v2305 = vld [vmem:[%s2189 + $0x1c8] sm:%s2182]
                %2306 = vst [vmem:[%s2190 + $0x348] sm:%s2182] %v2305
                %v2307 = vld [vmem:[%s2189 + $0x1d0] sm:%s2182]
                %2308 = vst [vmem:[%s2190 + $0x350] sm:%s2182] %v2307
                %v2309 = vld [vmem:[%s2189 + $0x1d8] sm:%s2182]
                %2310 = vst [vmem:[%s2190 + $0x358] sm:%s2182] %v2309
                %v2311 = vld [vmem:[%s2189 + $0x1e0] sm:%s2182]
                %2312 = vst [vmem:[%s2190 + $0x360] sm:%s2182] %v2311
                %v2313 = vld [vmem:[%s2189 + $0x1e8] sm:%s2182]
                %2314 = vst [vmem:[%s2190 + $0x368] sm:%s2182] %v2313
                %v2315 = vld [vmem:[%s2189 + $0x1f0] sm:%s2182]
                %2316 = vst [vmem:[%s2190 + $0x370] sm:%s2182] %v2315
                %v2317 = vld [vmem:[%s2189 + $0x1f8] sm:%s2182]
                %2318 = vst [vmem:[%s2190 + $0x378] sm:%s2182] %v2317
              $region77: #{tpu_custom_call.1} parent=71 // loop_footer
                %s2188 = sadd.s32 1, %s2184
              $region78: #{tpu_custom_call.1} parent=71 // loop_footer_branch
                %2183 = sbr.rel target = $region74
              $region79: #{tpu_custom_call.1} parent=71 // loop_exit
                _
            $region72: #{tpu_custom_call.1} parent=63 // pred_fallthru
              _
          $region64: #{tpu_custom_call.1} parent=59 // pred_fallthru
            _
          %2459 = vnop
        $region60: #{tpu_custom_call.1} parent=51 // pred_fallthru
          _
      $region52: #{tpu_custom_call.1} parent=5 // pred_fallthru
        _
      %p2460 = scmp.le.s32.totalorder 2, %s17
      // Predicated region
      $region95: #{tpu_custom_call.1} parent=5 // pred_check
        %p2461 = pneg %p2460
      $region96: #{tpu_custom_call.1} parent=5 // pred_check_branch
        %2463 = sbr.rel (%p2461) target = $region98
      $region97: #{tpu_custom_call.1} parent=5 // pred_region
        %s2464 = ssub.s32 %s17, 2
        // Predicated region
        $region99: #{tpu_custom_call.1} parent=97 // pred_check
          %p2465 = pneg %p242
        $region100: #{tpu_custom_call.1} parent=97 // pred_check_branch
          %2467 = sbr.rel (%p2465) target = $region102
        $region101: #{tpu_custom_call.1} parent=97 // pred_region
          %s2468 = sand.u32 %s227, 1
          %s2469 = sand.u32 %s227, 1
          %s2470 = smul.addr %s2469, 512
          %s2471 = scalar_lea.vmem [#allocation4], %s2470
        $region102: #{tpu_custom_call.1} parent=97 // pred_fallthru
          _
      $region98: #{tpu_custom_call.1} parent=5 // pred_fallthru
        _
    $region6: #{tpu_custom_call.1} parent=1 // loop_footer
      %s21 = sadd.s32 1, %s17
    $region7: #{tpu_custom_call.1} parent=1 // loop_footer_branch
      %16 = sbr.rel target = $region3
    $region8: #{tpu_custom_call.1} parent=1 // loop_exit
      _
    %2472 = vsyncpa [#allocation3], 1
    %s2473 = scalar_lea.sflag [#allocation3], 1
    %2474 = vsyncpa %s2473, 1

</llo_original>
